<compile_context>
chip_gen: v7x
topology: tpu7x:2x2x1
jax: 0.10.0
libtpu: 0.0.40
codegen_flags: <defaults>
</compile_context>

<pallas_src>
import numpy as np

import jax
import jax.numpy as jnp
from jax import lax
from jax.experimental import pallas as pl
from jax.experimental.pallas import tpu as pltpu


TB = 8  # default batch tile (one f32 sublane tile); raise to 32/64 for large batches


# ----------------------------------------------------------------------------
# Fused kernel: one grid step processes TB images end-to-end.
# Row layout of every 2-D slab: row = spatial_y * TB + batch_local.
# ----------------------------------------------------------------------------
def _mnist_fused_kernel(x_ref, t1_ref, b1_ref, t2_ref, b2_ref,
                        fw1_ref, fb1_ref, fw2_ref, fb2_ref,
                        logits_ref, e1_ref):
    tb = x_ref.shape[1] // 24

    def dot_bf16(a, w):
        # MXU in the weights' (bf16) dtype, accumulate in f32.
        return jnp.dot(a.astype(w.dtype), w, preferred_element_type=jnp.float32)

    # ---- conv1 (1x28x28 -> 10x24x24): ONE matmul, ky folded into K=140. ----
    xv = x_ref[0]                                        # (24*tb, 140) bf16
    c1 = dot_bf16(xv, t1_ref[...])                       # (24*tb, 256) f32

    # 2x2 max-pool + bias + ReLU, all VPU (no selector matmuls).
    half = 12 * tb
    rp1 = jnp.maximum(c1[:half, :], c1[half:, :])        # H window: even vs odd rows
    lp1 = jnp.maximum(rp1[:, :128], rp1[:, 128:])        # W window: even vs odd lanes
    h1 = jnp.maximum(lp1 + b1_ref[...], 0.0)             # (12*tb, 128) f32
    # h1 lanes: pooled_x(12)*10 + cin  (lanes 120..127 are zero padding)

    # ---- conv2 (10x12x12 -> 20x8x8): 5 Toeplitz matmuls, K = 128 exactly. ----
    # Dropout2d(conv2(x)) == identity in eval mode.
    # TODO(synk): training-mode stochastic Dropout2d / F.dropout not implemented.
    c2 = dot_bf16(h1[0:8 * tb, :], t2_ref[0])
    for ky in range(1, 5):
        c2 = c2 + dot_bf16(h1[ky * tb:(ky + 8) * tb, :], t2_ref[ky])  # (8*tb, 256)

    lp2 = jnp.maximum(c2[:, :128], c2[:, 128:])          # W window pool
    m2 = jnp.maximum(lp2 + b2_ref[...], 0.0)             # (8*tb, 128) f32
    # m2 rows: conv2_oy(8)*tb + b; lanes: pooled_x(4)*20 + cout (80..127 zero)

    # ---- conv2's H-window pool + flatten + fc1, folded into one y-loop. ----
    acc = None
    for y in range(4):
        blk = jnp.maximum(m2[2 * y * tb:(2 * y + 1) * tb, :],
                          m2[(2 * y + 1) * tb:(2 * y + 2) * tb, :])   # (tb, 128)
        d = dot_bf16(blk, fw1_ref[y])
        acc = d if acc is None else acc + d
    e1 = jnp.maximum(acc + fb1_ref[...], 0.0)            # (tb, 128); lanes 0..49 valid

    # F.dropout(e1) == identity in eval mode.
    logits_ref[...] = dot_bf16(e1, fw2_ref[...]) + fb2_ref[...]   # lanes 0..9 valid
    e1_ref[...] = e1


# ----------------------------------------------------------------------------
# One-time parameter packing (outside the forward hot path).  TB-independent.
# ----------------------------------------------------------------------------
def pack_params(p, dtype=jnp.bfloat16):
    f32 = np.float32

    def out_col(ox, c_per_px):
        # even output-x -> lanes [0,128), odd output-x -> lanes [128,256)
        return (ox % 2) * 128 + (ox // 2) * c_per_px

    # conv1 -> (140, 256): row = ky*28 + input_x, col = out_col(ox,10) + cout.
    w1 = np.asarray(p["w1"], f32)                        # (10, 1, 5, 5)
    t1 = np.zeros((140, 256), f32)
    for ky in range(5):
        for kx in range(5):
            for ox in range(24):
                c0 = out_col(ox, 10)
                t1[ky * 28 + ox + kx, c0:c0 + 10] = w1[:, 0, ky, kx]

    # conv2 -> (5, 128, 256): row = pooled_in_x*10 + cin, col = out_col(ox,20)+cout.
    w2 = np.asarray(p["w2"], f32)                        # (20, 10, 5, 5)
    t2 = np.zeros((5, 128, 256), f32)
    for ky in range(5):
        for kx in range(5):
            for ox in range(8):
                q = ox + kx
                c0 = out_col(ox, 20)
                t2[ky, q * 10:(q + 1) * 10, c0:c0 + 20] = w2[:, :, ky, kx].T

    # Pooled-layout conv biases (added after the pools, in f32 on the VPU).
    b1p = np.zeros((1, 128), f32)
    b1p[0, :120] = np.tile(np.asarray(p["b1"], f32), 12)
    b2p = np.zeros((1, 128), f32)
    b2p[0, :80] = np.tile(np.asarray(p["b2"], f32), 4)

    # fc1: PyTorch flat feature = c*16 + y*4 + x  (NCHW view of (20, 4, 4)).
    # Kernel feature per y-block: lane = x*20 + c.  Outputs padded to 128 lanes.
    fc1_w = np.asarray(p["fc1_w"], f32)                  # (50, 320)
    fw1 = np.zeros((4, 128, 128), f32)
    for y in range(4):
        for xx in range(4):
            for c in range(20):
                fw1[y, xx * 20 + c, :50] = fc1_w[:, c * 16 + y * 4 + xx]
    fb1 = np.zeros((1, 128), f32)
    fb1[0, :50] = np.asarray(p["fc1_b"], f32)

    fw2 = np.zeros((128, 128), f32)
    fw2[:50, :10] = np.asarray(p["fc2_w"], f32).T        # (50, 10)
    fb2 = np.zeros((1, 128), f32)
    fb2[0, :10] = np.asarray(p["fc2_b"], f32)

    return {
        "t1": jnp.asarray(t1, dtype), "b1": jnp.asarray(b1p),
        "t2": jnp.asarray(t2, dtype), "b2": jnp.asarray(b2p),
        "fw1": jnp.asarray(fw1, dtype), "fb1": jnp.asarray(fb1),
        "fw2": jnp.asarray(fw2, dtype), "fb2": jnp.asarray(fb2),
    }


# ----------------------------------------------------------------------------
# Forward wrapper (eval-mode semantics), single pallas_call.
# ----------------------------------------------------------------------------
def mnist_net_forward(x_nchw, packed, tb=TB):
    N, cin, H, W = x_nchw.shape
    assert (cin, H, W) == (1, 28, 28), "MNIST_Net expects (N, 1, 28, 28)"
    nblk = -(-N // tb)
    npad = nblk * tb

    x = x_nchw.reshape(N, 28, 28).astype(jnp.float32)
    if npad != N:
        x = jnp.pad(x, ((0, npad - N), (0, 0), (0, 0)))

    # Build conv1's input slab once per forward (cheap XLA data movement):
    # stack the 5 ky-shifted copies along lanes (K=140), order conv1 output
    # rows as [even oy | odd oy], and cast to bf16 (halves per-tile input DMA).
    xs = jnp.stack([x[:, ky:ky + 24, :] for ky in range(5)], axis=2)   # (npad,24,5,28)
    xs = xs.reshape(npad, 24, 140)
    xs = jnp.concatenate([xs[:, 0::2, :], xs[:, 1::2, :]], axis=1)     # [even|odd] oy
    xk = (xs.reshape(nblk, tb, 24, 140)
            .transpose(0, 2, 1, 3)
            .reshape(nblk, 24 * tb, 140)
            .astype(packed["t1"].dtype))

    def wspec(shape):
        n = len(shape)
        return pl.BlockSpec(shape, lambda i, n=n: (0,) * n)   # VMEM-resident weights

    logits_p, e1_p = pl.pallas_call(
        _mnist_fused_kernel,
        out_shape=(jax.ShapeDtypeStruct((npad, 128), jnp.float32),
                   jax.ShapeDtypeStruct((npad, 128), jnp.float32)),
        grid=(nblk,),
        in_specs=[
            pl.BlockSpec((1, 24 * tb, 140), lambda i: (i, 0, 0)),  # input batch tile
            wspec((140, 256)),      # t1 (conv1, ky folded into K)
            wspec((1, 128)),        # b1 (pooled layout)
            wspec((5, 128, 256)),   # t2 (conv2 Toeplitz per ky)
            wspec((1, 128)),        # b2
            wspec((4, 128, 128)),   # fc1 per-y blocks (flatten folded in)
            wspec((1, 128)),        # fb1
            wspec((128, 128)),      # fc2
            wspec((1, 128)),        # fb2
        ],
        out_specs=(pl.BlockSpec((tb, 128), lambda i: (i, 0)),
                   pl.BlockSpec((tb, 128), lambda i: (i, 0))),
        compiler_params=pltpu.CompilerParams(
            dimension_semantics=("parallel",),   # batch tiles shard across TCs (v7x)
            vmem_limit_bytes=32 * 1024 * 1024,
        ),
    )(xk, packed["t1"], packed["b1"], packed["t2"], packed["b2"],
      packed["fw1"], packed["fb1"], packed["fw2"], packed["fb2"])

    return logits_p[:N, :10], e1_p[:N, :50]


# ----------------------------------------------------------------------------
# Parameters (PyTorch layout) and a pure-JAX reference for the numeric check.
# ----------------------------------------------------------------------------
def init_params(key):
    ks = jax.random.split(key, 8)
    t = lambda k, shape, s: jax.random.normal(k, shape, jnp.float32) * s
    return {
        "w1": t(ks[0], (10, 1, 5, 5), 0.2),     # conv1
        "b1": t(ks[1], (10,), 0.1),
        "w2": t(ks[2], (20, 10, 5, 5), 0.06),   # conv2
        "b2": t(ks[3], (20,), 0.1),
        "fc1_w": t(ks[4], (50, 320), 0.05),     # fc1 (PyTorch: y = x @ W.T + b)
        "fc1_b": t(ks[5], (50,), 0.1),
        "fc2_w": t(ks[6], (10, 50), 0.1),       # fc2
        "fc2_b": t(ks[7], (10,), 0.1),
    }


def reference_forward(x_nchw, p):
    dn = ("NCHW", "OIHW", "NCHW")
    hp = lax.Precision.HIGHEST
    y = lax.conv_general_dilated(x_nchw, p["w1"], (1, 1), "VALID",
                                 dimension_numbers=dn, precision=hp)
    y = y + p["b1"][None, :, None, None]
    y = lax.reduce_window(y, -jnp.inf, lax.max, (1, 1, 2, 2), (1, 1, 2, 2), "VALID")
    y = jnp.maximum(y, 0.0)
    y = lax.conv_general_dilated(y, p["w2"], (1, 1), "VALID",
                                 dimension_numbers=dn, precision=hp)
    y = y + p["b2"][None, :, None, None]
    y = lax.reduce_window(y, -jnp.inf, lax.max, (1, 1, 2, 2), (1, 1, 2, 2), "VALID")
    y = jnp.maximum(y, 0.0)
    flat = y.reshape(y.shape[0], -1)
    e1 = jnp.maximum(jnp.matmul(flat, p["fc1_w"].T, precision=hp) + p["fc1_b"], 0.0)
    out = jnp.matmul(e1, p["fc2_w"].T, precision=hp) + p["fc2_b"]
    return out, e1


if __name__ == "__main__":
    key = jax.random.PRNGKey(0)
    pkey, xkey = jax.random.split(key)
    params = init_params(pkey)
    packed = pack_params(params)                     # bf16 MXU weights

    # MNIST-shaped input (28x28 is required by fc1's 320 = 20*4*4); batch = 2.
    x = jax.random.normal(xkey, (2, 1, 28, 28), jnp.float32)

    fwd = jax.jit(mnist_net_forward, static_argnames=("tb",))
    logits, e1 = fwd(x, packed)
    jax.block_until_ready((logits, e1))
    assert logits.shape == (2, 10) and e1.shape == (2, 50)

    ref_logits, ref_e1 = reference_forward(x, params)
    # bf16 MXU operands with f32 accumulation vs a Precision.HIGHEST f32
    # reference: expected error is a few 1e-3; 2e-2 still catches any
    # layout / packing bug (those give O(1) errors).
    if not (jnp.allclose(logits, ref_logits, atol=2e-2, rtol=2e-2)
            and jnp.allclose(e1, ref_e1, atol=2e-2, rtol=2e-2)):
        raise AssertionError("Pallas kernel output does not match the reference")

    # Larger-batch path: TB=32 -> multi-step grid (pipelined input DMA; on v7x
    # the "parallel" batch axis shards across both TensorCores).
    xb = jax.random.normal(jax.random.PRNGKey(1), (64, 1, 28, 28), jnp.float32)
    lb, eb = fwd(xb, packed, tb=32)
    jax.block_until_ready((lb, eb))
    rb_logits, rb_e1 = reference_forward(xb, params)
    if not (jnp.allclose(lb, rb_logits, atol=2e-2, rtol=2e-2)
            and jnp.allclose(eb, rb_e1, atol=2e-2, rtol=2e-2)):
        raise AssertionError("Pallas kernel (TB=32) does not match the reference")

    print("KERNEL_OK")
</pallas_src>

<mosaic_0001>
module attributes {stable_mosaic.version = 11 : i64} {
  func.func @_mnist_fused_kernel(%arg0: i32, %arg1: memref<1x192x140xbf16, #tpu.memory_space<vmem>>, %arg2: memref<140x256xbf16, #tpu.memory_space<vmem>>, %arg3: memref<1x128xf32, #tpu.memory_space<vmem>>, %arg4: memref<5x128x256xbf16, #tpu.memory_space<vmem>>, %arg5: memref<1x128xf32, #tpu.memory_space<vmem>>, %arg6: memref<4x128x128xbf16, #tpu.memory_space<vmem>>, %arg7: memref<1x128xf32, #tpu.memory_space<vmem>>, %arg8: memref<128x128xbf16, #tpu.memory_space<vmem>>, %arg9: memref<1x128xf32, #tpu.memory_space<vmem>>, %arg10: memref<8x128xf32, #tpu.memory_space<vmem>>, %arg11: memref<8x128xf32, #tpu.memory_space<vmem>>) attributes {dimension_semantics = [#tpu.dimension_semantics<parallel>], iteration_bounds = array<i64: 1>, scalar_prefetch = 0 : i64, scratch_operands = 0 : i64, tpu.core_type = #tpu.core_type<tc>, window_params = [{transform_indices = @transform_0, window_bounds = array<i64: 1, 192, 140>}, {pipeline_mode = #tpu.pipeline_mode<synchronous>, transform_indices = @transform_1, window_bounds = array<i64: 140, 256>}, {pipeline_mode = #tpu.pipeline_mode<synchronous>, transform_indices = @transform_2, window_bounds = array<i64: 1, 128>}, {pipeline_mode = #tpu.pipeline_mode<synchronous>, transform_indices = @transform_3, window_bounds = array<i64: 5, 128, 256>}, {pipeline_mode = #tpu.pipeline_mode<synchronous>, transform_indices = @transform_4, window_bounds = array<i64: 1, 128>}, {pipeline_mode = #tpu.pipeline_mode<synchronous>, transform_indices = @transform_5, window_bounds = array<i64: 4, 128, 128>}, {pipeline_mode = #tpu.pipeline_mode<synchronous>, transform_indices = @transform_6, window_bounds = array<i64: 1, 128>}, {pipeline_mode = #tpu.pipeline_mode<synchronous>, transform_indices = @transform_7, window_bounds = array<i64: 128, 128>}, {pipeline_mode = #tpu.pipeline_mode<synchronous>, transform_indices = @transform_8, window_bounds = array<i64: 1, 128>}, {transform_indices = @transform_9, window_bounds = array<i64: 8, 128>}, {transform_indices = @transform_10, window_bounds = array<i64: 8, 128>}]} {
    %c0 = arith.constant 0 : index
    %c0_0 = arith.constant 0 : index
    %c0_1 = arith.constant 0 : index
    %0 = vector.load %arg1[%c0, %c0_0, %c0_1] : memref<1x192x140xbf16, #tpu.memory_space<vmem>>, vector<1x192x140xbf16>
    %1 = vector.shape_cast %0 : vector<1x192x140xbf16> to vector<192x140xbf16>
    %c0_2 = arith.constant 0 : index
    %c0_3 = arith.constant 0 : index
    %2 = vector.load %arg2[%c0_2, %c0_3] : memref<140x256xbf16, #tpu.memory_space<vmem>>, vector<140x256xbf16>
    %cst = arith.constant dense<0.000000e+00> : vector<192x256xf32>
    %3 = tpu.matmul %1, %2, %cst {dimension_numbers = #tpu.dot_dimension_numbers<[1], [0], [0], [1], [0, 0, 1, 1], [], []>} : vector<192x140xbf16>, vector<140x256xbf16>, vector<192x256xf32> -> vector<192x256xf32>
    %4 = vector.extract_strided_slice %3 {offsets = [0, 0], sizes = [96, 256], strides = [1, 1]} : vector<192x256xf32> to vector<96x256xf32>
    %5 = vector.extract_strided_slice %3 {offsets = [96, 0], sizes = [96, 256], strides = [1, 1]} : vector<192x256xf32> to vector<96x256xf32>
    %6 = arith.maximumf %4, %5 : vector<96x256xf32>
    %7 = vector.extract_strided_slice %6 {offsets = [0, 0], sizes = [96, 128], strides = [1, 1]} : vector<96x256xf32> to vector<96x128xf32>
    %8 = vector.extract_strided_slice %6 {offsets = [0, 128], sizes = [96, 128], strides = [1, 1]} : vector<96x256xf32> to vector<96x128xf32>
    %9 = arith.maximumf %7, %8 : vector<96x128xf32>
    %c0_4 = arith.constant 0 : index
    %c0_5 = arith.constant 0 : index
    %10 = vector.load %arg3[%c0_4, %c0_5] : memref<1x128xf32, #tpu.memory_space<vmem>>, vector<1x128xf32>
    %11 = vector.broadcast %10 : vector<1x128xf32> to vector<96x128xf32>
    %12 = arith.addf %9, %11 : vector<96x128xf32>
    %cst_6 = arith.constant 0.000000e+00 : f32
    %13 = vector.broadcast %cst_6 : f32 to vector<96x128xf32>
    %14 = arith.maximumf %12, %13 : vector<96x128xf32>
    %15 = vector.extract_strided_slice %14 {offsets = [0, 0], sizes = [64, 128], strides = [1, 1]} : vector<96x128xf32> to vector<64x128xf32>
    %c0_7 = arith.constant 0 : index
    %c0_8 = arith.constant 0 : index
    %c0_9 = arith.constant 0 : index
    %16 = vector.load %arg4[%c0_7, %c0_8, %c0_9] : memref<5x128x256xbf16, #tpu.memory_space<vmem>>, vector<1x128x256xbf16>
    %17 = vector.shape_cast %16 : vector<1x128x256xbf16> to vector<128x256xbf16>
    %18 = arith.truncf %15 : vector<64x128xf32> to vector<64x128xbf16>
    %cst_10 = arith.constant dense<0.000000e+00> : vector<64x256xf32>
    %19 = tpu.matmul %18, %17, %cst_10 {dimension_numbers = #tpu.dot_dimension_numbers<[1], [0], [0], [1], [0, 0, 1, 1], [], []>} : vector<64x128xbf16>, vector<128x256xbf16>, vector<64x256xf32> -> vector<64x256xf32>
    %20 = vector.extract_strided_slice %14 {offsets = [8, 0], sizes = [64, 128], strides = [1, 1]} : vector<96x128xf32> to vector<64x128xf32>
    %c1 = arith.constant 1 : index
    %c0_11 = arith.constant 0 : index
    %c0_12 = arith.constant 0 : index
    %21 = vector.load %arg4[%c1, %c0_11, %c0_12] : memref<5x128x256xbf16, #tpu.memory_space<vmem>>, vector<1x128x256xbf16>
    %22 = vector.shape_cast %21 : vector<1x128x256xbf16> to vector<128x256xbf16>
    %23 = arith.truncf %20 : vector<64x128xf32> to vector<64x128xbf16>
    %cst_13 = arith.constant dense<0.000000e+00> : vector<64x256xf32>
    %24 = tpu.matmul %23, %22, %cst_13 {dimension_numbers = #tpu.dot_dimension_numbers<[1], [0], [0], [1], [0, 0, 1, 1], [], []>} : vector<64x128xbf16>, vector<128x256xbf16>, vector<64x256xf32> -> vector<64x256xf32>
    %25 = arith.addf %19, %24 : vector<64x256xf32>
    %26 = vector.extract_strided_slice %14 {offsets = [16, 0], sizes = [64, 128], strides = [1, 1]} : vector<96x128xf32> to vector<64x128xf32>
    %c2 = arith.constant 2 : index
    %c0_14 = arith.constant 0 : index
    %c0_15 = arith.constant 0 : index
    %27 = vector.load %arg4[%c2, %c0_14, %c0_15] : memref<5x128x256xbf16, #tpu.memory_space<vmem>>, vector<1x128x256xbf16>
    %28 = vector.shape_cast %27 : vector<1x128x256xbf16> to vector<128x256xbf16>
    %29 = arith.truncf %26 : vector<64x128xf32> to vector<64x128xbf16>
    %cst_16 = arith.constant dense<0.000000e+00> : vector<64x256xf32>
    %30 = tpu.matmul %29, %28, %cst_16 {dimension_numbers = #tpu.dot_dimension_numbers<[1], [0], [0], [1], [0, 0, 1, 1], [], []>} : vector<64x128xbf16>, vector<128x256xbf16>, vector<64x256xf32> -> vector<64x256xf32>
    %31 = arith.addf %25, %30 : vector<64x256xf32>
    %32 = vector.extract_strided_slice %14 {offsets = [24, 0], sizes = [64, 128], strides = [1, 1]} : vector<96x128xf32> to vector<64x128xf32>
    %c3 = arith.constant 3 : index
    %c0_17 = arith.constant 0 : index
    %c0_18 = arith.constant 0 : index
    %33 = vector.load %arg4[%c3, %c0_17, %c0_18] : memref<5x128x256xbf16, #tpu.memory_space<vmem>>, vector<1x128x256xbf16>
    %34 = vector.shape_cast %33 : vector<1x128x256xbf16> to vector<128x256xbf16>
    %35 = arith.truncf %32 : vector<64x128xf32> to vector<64x128xbf16>
    %cst_19 = arith.constant dense<0.000000e+00> : vector<64x256xf32>
    %36 = tpu.matmul %35, %34, %cst_19 {dimension_numbers = #tpu.dot_dimension_numbers<[1], [0], [0], [1], [0, 0, 1, 1], [], []>} : vector<64x128xbf16>, vector<128x256xbf16>, vector<64x256xf32> -> vector<64x256xf32>
    %37 = arith.addf %31, %36 : vector<64x256xf32>
    %38 = vector.extract_strided_slice %14 {offsets = [32, 0], sizes = [64, 128], strides = [1, 1]} : vector<96x128xf32> to vector<64x128xf32>
    %c4 = arith.constant 4 : index
    %c0_20 = arith.constant 0 : index
    %c0_21 = arith.constant 0 : index
    %39 = vector.load %arg4[%c4, %c0_20, %c0_21] : memref<5x128x256xbf16, #tpu.memory_space<vmem>>, vector<1x128x256xbf16>
    %40 = vector.shape_cast %39 : vector<1x128x256xbf16> to vector<128x256xbf16>
    %41 = arith.truncf %38 : vector<64x128xf32> to vector<64x128xbf16>
    %cst_22 = arith.constant dense<0.000000e+00> : vector<64x256xf32>
    %42 = tpu.matmul %41, %40, %cst_22 {dimension_numbers = #tpu.dot_dimension_numbers<[1], [0], [0], [1], [0, 0, 1, 1], [], []>} : vector<64x128xbf16>, vector<128x256xbf16>, vector<64x256xf32> -> vector<64x256xf32>
    %43 = arith.addf %37, %42 : vector<64x256xf32>
    %44 = vector.extract_strided_slice %43 {offsets = [0, 0], sizes = [64, 128], strides = [1, 1]} : vector<64x256xf32> to vector<64x128xf32>
    %45 = vector.extract_strided_slice %43 {offsets = [0, 128], sizes = [64, 128], strides = [1, 1]} : vector<64x256xf32> to vector<64x128xf32>
    %46 = arith.maximumf %44, %45 : vector<64x128xf32>
    %c0_23 = arith.constant 0 : index
    %c0_24 = arith.constant 0 : index
    %47 = vector.load %arg5[%c0_23, %c0_24] : memref<1x128xf32, #tpu.memory_space<vmem>>, vector<1x128xf32>
    %48 = vector.broadcast %47 : vector<1x128xf32> to vector<64x128xf32>
    %49 = arith.addf %46, %48 : vector<64x128xf32>
    %cst_25 = arith.constant 0.000000e+00 : f32
    %50 = vector.broadcast %cst_25 : f32 to vector<64x128xf32>
    %51 = arith.maximumf %49, %50 : vector<64x128xf32>
    %52 = vector.extract_strided_slice %51 {offsets = [0, 0], sizes = [8, 128], strides = [1, 1]} : vector<64x128xf32> to vector<8x128xf32>
    %53 = vector.extract_strided_slice %51 {offsets = [8, 0], sizes = [8, 128], strides = [1, 1]} : vector<64x128xf32> to vector<8x128xf32>
    %54 = arith.maximumf %52, %53 : vector<8x128xf32>
    %c0_26 = arith.constant 0 : index
    %c0_27 = arith.constant 0 : index
    %c0_28 = arith.constant 0 : index
    %55 = vector.load %arg6[%c0_26, %c0_27, %c0_28] : memref<4x128x128xbf16, #tpu.memory_space<vmem>>, vector<1x128x128xbf16>
    %56 = vector.shape_cast %55 : vector<1x128x128xbf16> to vector<128x128xbf16>
    %57 = arith.truncf %54 : vector<8x128xf32> to vector<8x128xbf16>
    %cst_29 = arith.constant dense<0.000000e+00> : vector<8x128xf32>
    %58 = tpu.matmul %57, %56, %cst_29 {dimension_numbers = #tpu.dot_dimension_numbers<[1], [0], [0], [1], [0, 0, 1, 1], [], []>} : vector<8x128xbf16>, vector<128x128xbf16>, vector<8x128xf32> -> vector<8x128xf32>
    %59 = vector.extract_strided_slice %51 {offsets = [16, 0], sizes = [8, 128], strides = [1, 1]} : vector<64x128xf32> to vector<8x128xf32>
    %60 = vector.extract_strided_slice %51 {offsets = [24, 0], sizes = [8, 128], strides = [1, 1]} : vector<64x128xf32> to vector<8x128xf32>
    %61 = arith.maximumf %59, %60 : vector<8x128xf32>
    %c1_30 = arith.constant 1 : index
    %c0_31 = arith.constant 0 : index
    %c0_32 = arith.constant 0 : index
    %62 = vector.load %arg6[%c1_30, %c0_31, %c0_32] : memref<4x128x128xbf16, #tpu.memory_space<vmem>>, vector<1x128x128xbf16>
    %63 = vector.shape_cast %62 : vector<1x128x128xbf16> to vector<128x128xbf16>
    %64 = arith.truncf %61 : vector<8x128xf32> to vector<8x128xbf16>
    %cst_33 = arith.constant dense<0.000000e+00> : vector<8x128xf32>
    %65 = tpu.matmul %64, %63, %cst_33 {dimension_numbers = #tpu.dot_dimension_numbers<[1], [0], [0], [1], [0, 0, 1, 1], [], []>} : vector<8x128xbf16>, vector<128x128xbf16>, vector<8x128xf32> -> vector<8x128xf32>
    %66 = arith.addf %58, %65 : vector<8x128xf32>
    %67 = vector.extract_strided_slice %51 {offsets = [32, 0], sizes = [8, 128], strides = [1, 1]} : vector<64x128xf32> to vector<8x128xf32>
    %68 = vector.extract_strided_slice %51 {offsets = [40, 0], sizes = [8, 128], strides = [1, 1]} : vector<64x128xf32> to vector<8x128xf32>
    %69 = arith.maximumf %67, %68 : vector<8x128xf32>
    %c2_34 = arith.constant 2 : index
    %c0_35 = arith.constant 0 : index
    %c0_36 = arith.constant 0 : index
    %70 = vector.load %arg6[%c2_34, %c0_35, %c0_36] : memref<4x128x128xbf16, #tpu.memory_space<vmem>>, vector<1x128x128xbf16>
    %71 = vector.shape_cast %70 : vector<1x128x128xbf16> to vector<128x128xbf16>
    %72 = arith.truncf %69 : vector<8x128xf32> to vector<8x128xbf16>
    %cst_37 = arith.constant dense<0.000000e+00> : vector<8x128xf32>
    %73 = tpu.matmul %72, %71, %cst_37 {dimension_numbers = #tpu.dot_dimension_numbers<[1], [0], [0], [1], [0, 0, 1, 1], [], []>} : vector<8x128xbf16>, vector<128x128xbf16>, vector<8x128xf32> -> vector<8x128xf32>
    %74 = arith.addf %66, %73 : vector<8x128xf32>
    %75 = vector.extract_strided_slice %51 {offsets = [48, 0], sizes = [8, 128], strides = [1, 1]} : vector<64x128xf32> to vector<8x128xf32>
    %76 = vector.extract_strided_slice %51 {offsets = [56, 0], sizes = [8, 128], strides = [1, 1]} : vector<64x128xf32> to vector<8x128xf32>
    %77 = arith.maximumf %75, %76 : vector<8x128xf32>
    %c3_38 = arith.constant 3 : index
    %c0_39 = arith.constant 0 : index
    %c0_40 = arith.constant 0 : index
    %78 = vector.load %arg6[%c3_38, %c0_39, %c0_40] : memref<4x128x128xbf16, #tpu.memory_space<vmem>>, vector<1x128x128xbf16>
    %79 = vector.shape_cast %78 : vector<1x128x128xbf16> to vector<128x128xbf16>
    %80 = arith.truncf %77 : vector<8x128xf32> to vector<8x128xbf16>
    %cst_41 = arith.constant dense<0.000000e+00> : vector<8x128xf32>
    %81 = tpu.matmul %80, %79, %cst_41 {dimension_numbers = #tpu.dot_dimension_numbers<[1], [0], [0], [1], [0, 0, 1, 1], [], []>} : vector<8x128xbf16>, vector<128x128xbf16>, vector<8x128xf32> -> vector<8x128xf32>
    %82 = arith.addf %74, %81 : vector<8x128xf32>
    %c0_42 = arith.constant 0 : index
    %c0_43 = arith.constant 0 : index
    %83 = vector.load %arg7[%c0_42, %c0_43] : memref<1x128xf32, #tpu.memory_space<vmem>>, vector<1x128xf32>
    %84 = vector.broadcast %83 : vector<1x128xf32> to vector<8x128xf32>
    %85 = arith.addf %82, %84 : vector<8x128xf32>
    %cst_44 = arith.constant 0.000000e+00 : f32
    %86 = vector.broadcast %cst_44 : f32 to vector<8x128xf32>
    %87 = arith.maximumf %85, %86 : vector<8x128xf32>
    %c0_45 = arith.constant 0 : index
    %c0_46 = arith.constant 0 : index
    %88 = vector.load %arg8[%c0_45, %c0_46] : memref<128x128xbf16, #tpu.memory_space<vmem>>, vector<128x128xbf16>
    %89 = arith.truncf %87 : vector<8x128xf32> to vector<8x128xbf16>
    %cst_47 = arith.constant dense<0.000000e+00> : vector<8x128xf32>
    %90 = tpu.matmul %89, %88, %cst_47 {dimension_numbers = #tpu.dot_dimension_numbers<[1], [0], [0], [1], [0, 0, 1, 1], [], []>} : vector<8x128xbf16>, vector<128x128xbf16>, vector<8x128xf32> -> vector<8x128xf32>
    %c0_48 = arith.constant 0 : index
    %c0_49 = arith.constant 0 : index
    %91 = vector.load %arg9[%c0_48, %c0_49] : memref<1x128xf32, #tpu.memory_space<vmem>>, vector<1x128xf32>
    %92 = vector.broadcast %91 : vector<1x128xf32> to vector<8x128xf32>
    %93 = arith.addf %90, %92 : vector<8x128xf32>
    %c0_50 = arith.constant 0 : index
    %c0_51 = arith.constant 0 : index
    %94 = vector.load %arg10[%c0_50, %c0_51] : memref<8x128xf32, #tpu.memory_space<vmem>>, vector<8x128xf32>
    tpu.vector_store %arg10[%c0_50, %c0_51], %93 {strides = array<i32>} : memref<8x128xf32, #tpu.memory_space<vmem>>, vector<8x128xf32>,
    %c0_52 = arith.constant 0 : index
    %c0_53 = arith.constant 0 : index
    %95 = vector.load %arg11[%c0_52, %c0_53] : memref<8x128xf32, #tpu.memory_space<vmem>>, vector<8x128xf32>
    tpu.vector_store %arg11[%c0_52, %c0_53], %87 {strides = array<i32>} : memref<8x128xf32, #tpu.memory_space<vmem>>, vector<8x128xf32>,
    return
  }
  func.func @transform_0(%arg0: i32) -> (i32, i32, i32) {
    %c0_i32 = arith.constant 0 : i32
    %c0_i32_0 = arith.constant 0 : i32
    %c0_i32_1 = arith.constant 0 : i32
    return %arg0, %c0_i32, %c0_i32_0 : i32, i32, i32
  }
  func.func @transform_1(%arg0: i32) -> (i32, i32) {
    %c0_i32 = arith.constant 0 : i32
    %c0_i32_0 = arith.constant 0 : i32
    %c0_i32_1 = arith.constant 0 : i32
    return %c0_i32, %c0_i32_0 : i32, i32
  }
  func.func @transform_2(%arg0: i32) -> (i32, i32) {
    %c0_i32 = arith.constant 0 : i32
    %c0_i32_0 = arith.constant 0 : i32
    %c0_i32_1 = arith.constant 0 : i32
    return %c0_i32, %c0_i32_0 : i32, i32
  }
  func.func @transform_3(%arg0: i32) -> (i32, i32, i32) {
    %c0_i32 = arith.constant 0 : i32
    %c0_i32_0 = arith.constant 0 : i32
    %c0_i32_1 = arith.constant 0 : i32
    %c0_i32_2 = arith.constant 0 : i32
    return %c0_i32, %c0_i32_0, %c0_i32_1 : i32, i32, i32
  }
  func.func @transform_4(%arg0: i32) -> (i32, i32) {
    %c0_i32 = arith.constant 0 : i32
    %c0_i32_0 = arith.constant 0 : i32
    %c0_i32_1 = arith.constant 0 : i32
    return %c0_i32, %c0_i32_0 : i32, i32
  }
  func.func @transform_5(%arg0: i32) -> (i32, i32, i32) {
    %c0_i32 = arith.constant 0 : i32
    %c0_i32_0 = arith.constant 0 : i32
    %c0_i32_1 = arith.constant 0 : i32
    %c0_i32_2 = arith.constant 0 : i32
    return %c0_i32, %c0_i32_0, %c0_i32_1 : i32, i32, i32
  }
  func.func @transform_6(%arg0: i32) -> (i32, i32) {
    %c0_i32 = arith.constant 0 : i32
    %c0_i32_0 = arith.constant 0 : i32
    %c0_i32_1 = arith.constant 0 : i32
    return %c0_i32, %c0_i32_0 : i32, i32
  }
  func.func @transform_7(%arg0: i32) -> (i32, i32) {
    %c0_i32 = arith.constant 0 : i32
    %c0_i32_0 = arith.constant 0 : i32
    %c0_i32_1 = arith.constant 0 : i32
    return %c0_i32, %c0_i32_0 : i32, i32
  }
  func.func @transform_8(%arg0: i32) -> (i32, i32) {
    %c0_i32 = arith.constant 0 : i32
    %c0_i32_0 = arith.constant 0 : i32
    %c0_i32_1 = arith.constant 0 : i32
    return %c0_i32, %c0_i32_0 : i32, i32
  }
  func.func @transform_9(%arg0: i32) -> (i32, i32) {
    %c0_i32 = arith.constant 0 : i32
    %c0_i32_0 = arith.constant 0 : i32
    return %arg0, %c0_i32 : i32, i32
  }
  func.func @transform_10(%arg0: i32) -> (i32, i32) {
    %c0_i32 = arith.constant 0 : i32
    %c0_i32_0 = arith.constant 0 : i32
    return %arg0, %c0_i32 : i32, i32
  }
}

</mosaic_0001>

<llo_original>
// kernel: mnist_net_forward.1
$region0: #{mnist_net_forward.1}
  #allocation0 [shape = 'u32[]', space=smem, size = 0x4, offset = 0x4, fixed_abs, tag = 'smem constant byte address 0x4 - core index']
  #allocation1 [shape = 'u32[144,128]{1,0:T(1,128)}', space=vmem, size = 0x12000, scoped, tag = 'internal scratch']
  %s0 = inlined_call_operand.vmem [shape: bf16[1,192,140], index: 0, kind: input, shape index: {}]
  %s1 = inlined_call_operand.vmem [shape: bf16[140,256], index: 1, kind: input, shape index: {}]
  %s2 = inlined_call_operand.vmem [shape: f32[1,128], index: 2, kind: input, shape index: {}]
  %s3 = inlined_call_operand.vmem [shape: bf16[5,128,256], index: 3, kind: input, shape index: {}]
  %s4 = inlined_call_operand.vmem [shape: f32[1,128], index: 4, kind: input, shape index: {}]
  %s5 = inlined_call_operand.vmem [shape: bf16[4,128,128], index: 5, kind: input, shape index: {}]
  %s6 = inlined_call_operand.vmem [shape: f32[1,128], index: 6, kind: input, shape index: {}]
  %s7 = inlined_call_operand.vmem [shape: bf16[128,128], index: 7, kind: input, shape index: {}]
  %s8 = inlined_call_operand.vmem [shape: f32[1,128], index: 8, kind: input, shape index: {}]
  %s9 = inlined_call_operand.vmem [shape: f32[8,128], index: 9, kind: output, shape index: {0}]
  %s10 = inlined_call_operand.vmem [shape: f32[8,128], index: 10, kind: output, shape index: {1}]
  %11 = xla_tuple %s9, %s10
  %s12 = sld [smem:[#allocation0]]
  $region54: #{mnist_net_forward.1} parent=0
    _
  %s14 = ssub.s32 1, %s12
  %s15 = scalar_select 0, %s14, %s12
  // Predicated region
  $region2: #{mnist_net_forward.1} parent=0 // pred_check
    _
  $region3: #{mnist_net_forward.1} parent=0 // pred_check_branch
    %17 = sbr.rel (0) target = $region5
  $region4: #{mnist_net_forward.1} parent=0 // pred_region
    _
  $region5: #{mnist_net_forward.1} parent=0 // pred_fallthru
    _
  // Predicated region
  $region6: #{mnist_net_forward.1} parent=0 // pred_check
    _
  $region7: #{mnist_net_forward.1} parent=0 // pred_check_branch
    %19 = sbr.rel (0) target = $region9
  $region8: #{mnist_net_forward.1} parent=0 // pred_region
    _
  $region9: #{mnist_net_forward.1} parent=0 // pred_fallthru
    _
  // Predicated region
  $region10: #{mnist_net_forward.1} parent=0 // pred_check
    _
  $region11: #{mnist_net_forward.1} parent=0 // pred_check_branch
    %21 = sbr.rel (0) target = $region13
  $region12: #{mnist_net_forward.1} parent=0 // pred_region
    _
  $region13: #{mnist_net_forward.1} parent=0 // pred_fallthru
    _
  // Predicated region
  $region14: #{mnist_net_forward.1} parent=0 // pred_check
    _
  $region15: #{mnist_net_forward.1} parent=0 // pred_check_branch
    %23 = sbr.rel (0) target = $region17
  $region16: #{mnist_net_forward.1} parent=0 // pred_region
    _
  $region17: #{mnist_net_forward.1} parent=0 // pred_fallthru
    _
  // Predicated region
  $region18: #{mnist_net_forward.1} parent=0 // pred_check
    _
  $region19: #{mnist_net_forward.1} parent=0 // pred_check_branch
    %25 = sbr.rel (0) target = $region21
  $region20: #{mnist_net_forward.1} parent=0 // pred_region
    _
  $region21: #{mnist_net_forward.1} parent=0 // pred_fallthru
    _
  // Predicated region
  $region22: #{mnist_net_forward.1} parent=0 // pred_check
    _
  $region23: #{mnist_net_forward.1} parent=0 // pred_check_branch
    %27 = sbr.rel (0) target = $region25
  $region24: #{mnist_net_forward.1} parent=0 // pred_region
    _
  $region25: #{mnist_net_forward.1} parent=0 // pred_fallthru
    _
  // Predicated region
  $region26: #{mnist_net_forward.1} parent=0 // pred_check
    _
  $region27: #{mnist_net_forward.1} parent=0 // pred_check_branch
    %29 = sbr.rel (0) target = $region29
  $region28: #{mnist_net_forward.1} parent=0 // pred_region
    _
  $region29: #{mnist_net_forward.1} parent=0 // pred_fallthru
    _
  // Predicated region
  $region30: #{mnist_net_forward.1} parent=0 // pred_check
    _
  $region31: #{mnist_net_forward.1} parent=0 // pred_check_branch
    %31 = sbr.rel (0) target = $region33
  $region32: #{mnist_net_forward.1} parent=0 // pred_region
    _
  $region33: #{mnist_net_forward.1} parent=0 // pred_fallthru
    _
  // Predicated region
  $region34: #{mnist_net_forward.1} parent=0 // pred_check
    _
  $region35: #{mnist_net_forward.1} parent=0 // pred_check_branch
    %33 = sbr.rel (0) target = $region37
  $region36: #{mnist_net_forward.1} parent=0 // pred_region
    _
  $region37: #{mnist_net_forward.1} parent=0 // pred_fallthru
    _
  %v35 = vld [vmem:[%s0] sm:$0xff]
  %v36 = vld [vmem:[%s0 + $0x8] sm:$0xff]
  %v37 = vld [vmem:[%s0 + $0x10] sm:$0xff]
  %v38 = vld [vmem:[%s0 + $0x18] sm:$0xff]
  %v39 = vld [vmem:[%s0 + $0x20] sm:$0xff]
  %v40 = vld [vmem:[%s0 + $0x28] sm:$0xff]
  %v41 = vld [vmem:[%s0 + $0x30] sm:$0xff]
  %v42 = vld [vmem:[%s0 + $0x38] sm:$0xff]
  %v43 = vld [vmem:[%s0 + $0x40] sm:$0xff]
  %v44 = vld [vmem:[%s0 + $0x48] sm:$0xff]
  %v45 = vld [vmem:[%s0 + $0x50] sm:$0xff]
  %v46 = vld [vmem:[%s0 + $0x58] sm:$0xff]
  %v47 = vld [vmem:[%s0 + $0x60] sm:$0xff]
  %v48 = vld [vmem:[%s0 + $0x68] sm:$0xff]
  %v49 = vld [vmem:[%s0 + $0x70] sm:$0xff]
  %v50 = vld [vmem:[%s0 + $0x78] sm:$0xff]
  %v51 = vld [vmem:[%s0 + $0x80] sm:$0xff]
  %v52 = vld [vmem:[%s0 + $0x88] sm:$0xff]
  %v53 = vld [vmem:[%s0 + $0x90] sm:$0xff]
  %v54 = vld [vmem:[%s0 + $0x98] sm:$0xff]
  %v55 = vld [vmem:[%s0 + $0xa0] sm:$0xff]
  %v56 = vld [vmem:[%s0 + $0xa8] sm:$0xff]
  %v57 = vld [vmem:[%s0 + $0xb0] sm:$0xff]
  %v58 = vld [vmem:[%s0 + $0xb8] sm:$0xff]
  %v59 = vld [vmem:[%s1] sm:$0xff]
  %v60 = vld [vmem:[%s1 + $0x8] sm:$0xff]
  %v61 = vld [vmem:[%s1 + $0x10] sm:$0xff]
  %v62 = vld [vmem:[%s1 + $0x18] sm:$0xff]
  %v63 = vld [vmem:[%s1 + $0x20] sm:$0xff]
  %v64 = vld [vmem:[%s1 + $0x28] sm:$0xff]
  %v65 = vld [vmem:[%s1 + $0x30] sm:$0xff]
  %v66 = vld [vmem:[%s1 + $0x38] sm:$0xff]
  %v67 = vld [vmem:[%s1 + $0x40] sm:$0xff]
  %v68 = vld [vmem:[%s1 + $0x48] sm:$0xff]
  %v69 = vld [vmem:[%s1 + $0x50] sm:$0xff]
  %v70 = vld [vmem:[%s1 + $0x58] sm:$0xff]
  %v71 = vld [vmem:[%s1 + $0x60] sm:$0xff]
  %v72 = vld [vmem:[%s1 + $0x68] sm:$0xff]
  %v73 = vld [vmem:[%s1 + $0x70] sm:$0xff]
  %v74 = vld [vmem:[%s1 + $0x78] sm:$0xff]
  %v75 = vld [vmem:[%s1 + $0x80] sm:$0xff]
  %v76 = vld [vmem:[%s1 + $0x88] sm:$0x33]
  %v101 = vunpack.c.l.b16 %v35
  %v102 = vunpack.c.h.b16 %v35
  %v103 = vunpack.c.l.b16 %v36
  %v104 = vunpack.c.h.b16 %v36
  %v105 = vunpack.c.l.b16 %v37
  %v106 = vunpack.c.h.b16 %v37
  %v107 = vunpack.c.l.b16 %v38
  %v108 = vunpack.c.h.b16 %v38
  %v109 = vunpack.c.l.b16 %v39
  %v110 = vunpack.c.h.b16 %v39
  %v111 = vunpack.c.l.b16 %v40
  %v112 = vunpack.c.h.b16 %v40
  %v113 = vunpack.c.l.b16 %v41
  %v114 = vunpack.c.h.b16 %v41
  %v115 = vunpack.c.l.b16 %v42
  %v116 = vunpack.c.h.b16 %v42
  %v117 = vunpack.c.l.b16 %v43
  %v118 = vunpack.c.h.b16 %v43
  %v119 = vunpack.c.l.b16 %v44
  %v120 = vunpack.c.h.b16 %v44
  %v121 = vunpack.c.l.b16 %v45
  %v122 = vunpack.c.h.b16 %v45
  %v123 = vunpack.c.l.b16 %v46
  %v124 = vunpack.c.h.b16 %v46
  %v125 = vunpack.c.l.b16 %v47
  %v126 = vunpack.c.h.b16 %v47
  %v127 = vunpack.c.l.b16 %v48
  %v128 = vunpack.c.h.b16 %v48
  %v129 = vunpack.c.l.b16 %v49
  %v130 = vunpack.c.h.b16 %v49
  %v131 = vunpack.c.l.b16 %v50
  %v132 = vunpack.c.h.b16 %v50
  %v133 = vunpack.c.l.b16 %v51
  %v134 = vunpack.c.h.b16 %v51
  %v135 = vunpack.c.l.b16 %v52
  %v136 = vunpack.c.h.b16 %v52
  %v137 = vunpack.c.l.b16 %v53
  %v138 = vunpack.c.h.b16 %v53
  %v139 = vunpack.c.l.b16 %v54
  %v140 = vunpack.c.h.b16 %v54
  %v141 = vunpack.c.l.b16 %v55
  %v142 = vunpack.c.h.b16 %v55
  %v143 = vunpack.c.l.b16 %v56
  %v144 = vunpack.c.h.b16 %v56
  %v145 = vunpack.c.l.b16 %v57
  %v146 = vunpack.c.h.b16 %v57
  %v147 = vunpack.c.l.b16 %v58
  %v148 = vunpack.c.h.b16 %v58
  %v149 = vpack.c.b16 %v103, %v101
  %v150 = vpack.c.b16 %v104, %v102
  %v151 = vpack.c.b16 %v107, %v105
  %v152 = vpack.c.b16 %v108, %v106
  %v153 = vpack.c.b16 %v111, %v109
  %v154 = vpack.c.b16 %v112, %v110
  %v155 = vpack.c.b16 %v115, %v113
  %v156 = vpack.c.b16 %v116, %v114
  %v157 = vpack.c.b16 %v119, %v117
  %v158 = vpack.c.b16 %v120, %v118
  %v159 = vpack.c.b16 %v123, %v121
  %v160 = vpack.c.b16 %v124, %v122
  %v161 = vpack.c.b16 %v127, %v125
  %v162 = vpack.c.b16 %v128, %v126
  %v163 = vpack.c.b16 %v131, %v129
  %v164 = vpack.c.b16 %v132, %v130
  %v165 = vpack.c.b16 %v135, %v133
  %v166 = vpack.c.b16 %v136, %v134
  %v167 = vpack.c.b16 %v139, %v137
  %v168 = vpack.c.b16 %v140, %v138
  %v169 = vpack.c.b16 %v143, %v141
  %v170 = vpack.c.b16 %v144, %v142
  %v171 = vpack.c.b16 %v147, %v145
  %v172 = vpack.c.b16 %v148, %v146
  %v203 = vunpack.c.l.b16 %v59
  %v204 = vunpack.c.h.b16 %v59
  %v205 = vunpack.c.l.b16 %v60
  %v206 = vunpack.c.h.b16 %v60
  %v207 = vunpack.c.l.b16 %v61
  %v208 = vunpack.c.h.b16 %v61
  %v209 = vunpack.c.l.b16 %v62
  %v210 = vunpack.c.h.b16 %v62
  %v211 = vunpack.c.l.b16 %v63
  %v212 = vunpack.c.h.b16 %v63
  %v213 = vunpack.c.l.b16 %v64
  %v214 = vunpack.c.h.b16 %v64
  %v215 = vunpack.c.l.b16 %v65
  %v216 = vunpack.c.h.b16 %v65
  %v217 = vunpack.c.l.b16 %v66
  %v218 = vunpack.c.h.b16 %v66
  %v219 = vunpack.c.l.b16 %v67
  %v220 = vunpack.c.h.b16 %v67
  %v221 = vunpack.c.l.b16 %v68
  %v222 = vunpack.c.h.b16 %v68
  %v223 = vunpack.c.l.b16 %v69
  %v224 = vunpack.c.h.b16 %v69
  %v225 = vunpack.c.l.b16 %v70
  %v226 = vunpack.c.h.b16 %v70
  %v227 = vunpack.c.l.b16 %v71
  %v228 = vunpack.c.h.b16 %v71
  %v229 = vunpack.c.l.b16 %v72
  %v230 = vunpack.c.h.b16 %v72
  %v231 = vunpack.c.l.b16 %v73
  %v232 = vunpack.c.h.b16 %v73
  %v233 = vunpack.c.l.b16 %v74
  %v234 = vunpack.c.h.b16 %v74
  %v235 = vunpack.c.l.b16 %v75
  %v236 = vunpack.c.h.b16 %v75
  %v237 = vunpack.c.l.b16 %v76
  %v238 = vunpack.c.h.b16 %v76
  %v239 = vpack.c.b16 %v205, %v203
  %v240 = vpack.c.b16 %v206, %v204
  %v241 = vpack.c.b16 %v209, %v207
  %v242 = vpack.c.b16 %v210, %v208
  %v243 = vpack.c.b16 %v213, %v211
  %v244 = vpack.c.b16 %v214, %v212
  %v245 = vpack.c.b16 %v217, %v215
  %v246 = vpack.c.b16 %v218, %v216
  %v247 = vpack.c.b16 %v221, %v219
  %v248 = vpack.c.b16 %v222, %v220
  %v249 = vpack.c.b16 %v225, %v223
  %v250 = vpack.c.b16 %v226, %v224
  %v251 = vpack.c.b16 %v229, %v227
  %v252 = vpack.c.b16 %v230, %v228
  %v253 = vpack.c.b16 %v233, %v231
  %v254 = vpack.c.b16 %v234, %v232
  %v255 = vpack.c.b16 %v237, %v235
  %v256 = vpack.c.b16 %v238, %v236
  %vm273 = vcmask 97280
  %v275 = vsel %vm273, %v150, 0
  %v278 = vsel %vm273, %v152, 0
  %v281 = vsel %vm273, %v154, 0
  %v284 = vsel %vm273, %v156, 0
  %v287 = vsel %vm273, %v158, 0
  %v290 = vsel %vm273, %v160, 0
  %v293 = vsel %vm273, %v162, 0
  %v296 = vsel %vm273, %v164, 0
  %v299 = vsel %vm273, %v166, 0
  %v302 = vsel %vm273, %v168, 0
  %v305 = vsel %vm273, %v170, 0
  %v308 = vsel %vm273, %v172, 0
  %vm310 = vcmask 1045504
  %v312 = vsel %vm310, %v255, 0
  %v315 = vsel %vm310, %v256, 0
  %317 = vmatprep.subr.bf16.mxu0 %v240
  %318 = vmatpush1.bf16.msra.mxu0 %v239
  %319 = vmatprep.subr.bf16.mxu0 %v242
  %320 = vmatpush1.bf16.msra.mxu0 %v241
  %321 = vmatprep.subr.bf16.mxu0 %v244
  %322 = vmatpush1.bf16.msra.mxu0 %v243
  %323 = vmatprep.subr.bf16.mxu0 %v246
  %324 = vmatpush1.bf16.msra.mxu0 %v245
  %325 = vmatprep.subr.bf16.mxu0 %v248
  %326 = vmatpush1.bf16.msra.mxu0 %v247
  %327 = vmatprep.subr.bf16.mxu0 %v250
  %328 = vmatpush1.bf16.msra.mxu0 %v249
  %329 = vmatprep.subr.bf16.mxu0 %v252
  %330 = vmatpush1.bf16.msra.mxu0 %v251
  %331 = vmatprep.subr.bf16.mxu0 %v254
  %332 = vmatpush1.bf16.msra.mxu0 %v253
  %333 = vmatprep.subr.bf16.mxu0 %v315
  %334 = vmatpush1.bf16.msra.mxu0 %v312
  %335 = vmatprep.subr.bf16.mxu0 0
  %336 = vmatpush1.bf16.msra.mxu0 0
  %337 = vmatprep.subr.bf16.mxu0 0
  %338 = vmatpush1.bf16.msra.mxu0 0
  %339 = vmatprep.subr.bf16.mxu0 0
  %340 = vmatpush1.bf16.msra.mxu0 0
  %341 = vmatprep.subr.bf16.mxu0 0
  %342 = vmatpush1.bf16.msra.mxu0 0
  %343 = vmatprep.subr.bf16.mxu0 0
  %344 = vmatpush1.bf16.msra.mxu0 0
  %345 = vmatprep.subr.bf16.mxu0 0
  %346 = vmatpush1.bf16.msra.mxu0 0
  %347 = vmatprep.subr.bf16.mxu0 0
  %348 = vmatpush1.bf16.msra.mxu0 0
  %349 = vmatprep.mubr.bf16.mxu0 %v275
  %350 = vmatmul.mubr.bf16.gmra.mrb[0].mxu0 %v149
  %v351 = vpop.f32.mrb[0].mxu0
  %v352 = vadd.f32 0.0, %v351
  %v353 = vpop.f32.mrb[0].mxu0
  %v354 = vadd.f32 0.0, %v353
  %v355 = vpop.f32.mrb[0].mxu0
  %v356 = vadd.f32 0.0, %v355
  %v357 = vpop.f32.mrb[0].mxu0
  %v358 = vadd.f32 0.0, %v357
  %359 = vmatprep.mubr.bf16.mxu0 %v278
  %360 = vmatmul.mubr.bf16.gmra.mrb[0].mxu0 %v151
  %v361 = vpop.f32.mrb[0].mxu0
  %v362 = vadd.f32 0.0, %v361
  %v363 = vpop.f32.mrb[0].mxu0
  %v364 = vadd.f32 0.0, %v363
  %v365 = vpop.f32.mrb[0].mxu0
  %v366 = vadd.f32 0.0, %v365
  %v367 = vpop.f32.mrb[0].mxu0
  %v368 = vadd.f32 0.0, %v367
  %369 = vmatprep.mubr.bf16.mxu0 %v281
  %370 = vmatmul.mubr.bf16.gmra.mrb[0].mxu0 %v153
  %v371 = vpop.f32.mrb[0].mxu0
  %v372 = vadd.f32 0.0, %v371
  %v373 = vpop.f32.mrb[0].mxu0
  %v374 = vadd.f32 0.0, %v373
  %v375 = vpop.f32.mrb[0].mxu0
  %v376 = vadd.f32 0.0, %v375
  %v377 = vpop.f32.mrb[0].mxu0
  %v378 = vadd.f32 0.0, %v377
  %379 = vmatprep.mubr.bf16.mxu0 %v284
  %380 = vmatmul.mubr.bf16.gmra.mrb[0].mxu0 %v155
  %v381 = vpop.f32.mrb[0].mxu0
  %v382 = vadd.f32 0.0, %v381
  %v383 = vpop.f32.mrb[0].mxu0
  %v384 = vadd.f32 0.0, %v383
  %v385 = vpop.f32.mrb[0].mxu0
  %v386 = vadd.f32 0.0, %v385
  %v387 = vpop.f32.mrb[0].mxu0
  %v388 = vadd.f32 0.0, %v387
  %389 = vmatprep.mubr.bf16.mxu0 %v287
  %390 = vmatmul.mubr.bf16.gmra.mrb[0].mxu0 %v157
  %v391 = vpop.f32.mrb[0].mxu0
  %v392 = vadd.f32 0.0, %v391
  %v393 = vpop.f32.mrb[0].mxu0
  %v394 = vadd.f32 0.0, %v393
  %v395 = vpop.f32.mrb[0].mxu0
  %v396 = vadd.f32 0.0, %v395
  %v397 = vpop.f32.mrb[0].mxu0
  %v398 = vadd.f32 0.0, %v397
  %399 = vmatprep.mubr.bf16.mxu0 %v290
  %400 = vmatmul.mubr.bf16.gmra.mrb[0].mxu0 %v159
  %v401 = vpop.f32.mrb[0].mxu0
  %v402 = vadd.f32 0.0, %v401
  %v403 = vpop.f32.mrb[0].mxu0
  %v404 = vadd.f32 0.0, %v403
  %v405 = vpop.f32.mrb[0].mxu0
  %v406 = vadd.f32 0.0, %v405
  %v407 = vpop.f32.mrb[0].mxu0
  %v408 = vadd.f32 0.0, %v407
  %409 = vmatprep.mubr.bf16.mxu0 %v293
  %410 = vmatmul.mubr.bf16.gmra.mrb[0].mxu0 %v161
  %v411 = vpop.f32.mrb[0].mxu0
  %v412 = vadd.f32 0.0, %v411
  %v413 = vpop.f32.mrb[0].mxu0
  %v414 = vadd.f32 0.0, %v413
  %v415 = vpop.f32.mrb[0].mxu0
  %v416 = vadd.f32 0.0, %v415
  %v417 = vpop.f32.mrb[0].mxu0
  %v418 = vadd.f32 0.0, %v417
  %419 = vmatprep.mubr.bf16.mxu0 %v296
  %420 = vmatmul.mubr.bf16.gmra.mrb[0].mxu0 %v163
  %v421 = vpop.f32.mrb[0].mxu0
  %v422 = vadd.f32 0.0, %v421
  %v423 = vpop.f32.mrb[0].mxu0
  %v424 = vadd.f32 0.0, %v423
  %v425 = vpop.f32.mrb[0].mxu0
  %v426 = vadd.f32 0.0, %v425
  %v427 = vpop.f32.mrb[0].mxu0
  %v428 = vadd.f32 0.0, %v427
  %429 = vmatprep.mubr.bf16.mxu0 %v299
  %430 = vmatmul.mubr.bf16.gmra.mrb[0].mxu0 %v165
  %v431 = vpop.f32.mrb[0].mxu0
  %v432 = vadd.f32 0.0, %v431
  %v433 = vpop.f32.mrb[0].mxu0
  %v434 = vadd.f32 0.0, %v433
  %v435 = vpop.f32.mrb[0].mxu0
  %v436 = vadd.f32 0.0, %v435
  %v437 = vpop.f32.mrb[0].mxu0
  %v438 = vadd.f32 0.0, %v437
  %439 = vmatprep.mubr.bf16.mxu0 %v302
  %440 = vmatmul.mubr.bf16.gmra.mrb[0].mxu0 %v167
  %v441 = vpop.f32.mrb[0].mxu0
  %v442 = vadd.f32 0.0, %v441
  %v443 = vpop.f32.mrb[0].mxu0
  %v444 = vadd.f32 0.0, %v443
  %v445 = vpop.f32.mrb[0].mxu0
  %v446 = vadd.f32 0.0, %v445
  %v447 = vpop.f32.mrb[0].mxu0
  %v448 = vadd.f32 0.0, %v447
  %449 = vmatprep.mubr.bf16.mxu0 %v305
  %450 = vmatmul.mubr.bf16.gmra.mrb[0].mxu0 %v169
  %v451 = vpop.f32.mrb[0].mxu0
  %v452 = vadd.f32 0.0, %v451
  %v453 = vpop.f32.mrb[0].mxu0
  %v454 = vadd.f32 0.0, %v453
  %v455 = vpop.f32.mrb[0].mxu0
  %v456 = vadd.f32 0.0, %v455
  %v457 = vpop.f32.mrb[0].mxu0
  %v458 = vadd.f32 0.0, %v457
  %459 = vmatprep.mubr.bf16.mxu0 %v308
  %460 = vmatmul.mubr.bf16.gmra.mrb[0].mxu0 %v171
  %v461 = vpop.f32.mrb[0].mxu0
  %v462 = vadd.f32 0.0, %v461
  %v463 = vpop.f32.mrb[0].mxu0
  %v464 = vadd.f32 0.0, %v463
  %v465 = vpop.f32.mrb[0].mxu0
  %v466 = vadd.f32 0.0, %v465
  %v467 = vpop.f32.mrb[0].mxu0
  %v468 = vadd.f32 0.0, %v467
  %469 = vdwg.mxu0
  %v470 = vmax.f32 %v352, %v412
  %v471 = vmax.f32 %v354, %v414
  %v472 = vmax.f32 %v356, %v416
  %v473 = vmax.f32 %v358, %v418
  %v474 = vmax.f32 %v362, %v422
  %v475 = vmax.f32 %v364, %v424
  %v476 = vmax.f32 %v366, %v426
  %v477 = vmax.f32 %v368, %v428
  %v478 = vmax.f32 %v372, %v432
  %v479 = vmax.f32 %v374, %v434
  %v480 = vmax.f32 %v376, %v436
  %v481 = vmax.f32 %v378, %v438
  %v482 = vmax.f32 %v382, %v442
  %v483 = vmax.f32 %v384, %v444
  %v484 = vmax.f32 %v386, %v446
  %v485 = vmax.f32 %v388, %v448
  %v486 = vmax.f32 %v392, %v452
  %v487 = vmax.f32 %v394, %v454
  %v488 = vmax.f32 %v396, %v456
  %v489 = vmax.f32 %v398, %v458
  %v490 = vmax.f32 %v402, %v462
  %v491 = vmax.f32 %v404, %v464
  %v492 = vmax.f32 %v406, %v466
  %v493 = vmax.f32 %v408, %v468
  %v494 = vmax.f32 %v470, %v471
  %v495 = vmax.f32 %v472, %v473
  %v496 = vmax.f32 %v474, %v475
  %v497 = vmax.f32 %v476, %v477
  %v498 = vmax.f32 %v478, %v479
  %v499 = vmax.f32 %v480, %v481
  %v500 = vmax.f32 %v482, %v483
  %v501 = vmax.f32 %v484, %v485
  %v502 = vmax.f32 %v486, %v487
  %v503 = vmax.f32 %v488, %v489
  %v504 = vmax.f32 %v490, %v491
  %v505 = vmax.f32 %v492, %v493
  %v506 = vld [vmem:[%s2] sm:$0x1]
  %v508 = vlaneseq
  %v509 = vshrl.u32 %v508, 7
  %v510 = vsub.s32 0, %v509
  %v511 = vrot.slane %v506, %v510
  %v513 = vadd.f32 %v494, %v511
  %v514 = vadd.f32 %v495, %v511
  %v515 = vadd.f32 %v496, %v511
  %v516 = vadd.f32 %v497, %v511
  %v517 = vadd.f32 %v498, %v511
  %v518 = vadd.f32 %v499, %v511
  %v519 = vadd.f32 %v500, %v511
  %v520 = vadd.f32 %v501, %v511
  %v521 = vadd.f32 %v502, %v511
  %v522 = vadd.f32 %v503, %v511
  %v523 = vadd.f32 %v504, %v511
  %v524 = vadd.f32 %v505, %v511
  %v525 = vmax.f32 %v513, 0.0
  %v526 = vmax.f32 %v514, 0.0
  %v527 = vmax.f32 %v515, 0.0
  %v528 = vmax.f32 %v516, 0.0
  %v529 = vmax.f32 %v517, 0.0
  %v530 = vmax.f32 %v518, 0.0
  %v531 = vmax.f32 %v519, 0.0
  %v532 = vmax.f32 %v520, 0.0
  %v533 = vmax.f32 %v521, 0.0
  %v534 = vmax.f32 %v522, 0.0
  %v535 = vmax.f32 %v523, 0.0
  %v536 = vmax.f32 %v524, 0.0
  %v537 = vld [vmem:[%s3] sm:$0xff]
  %v538 = vld [vmem:[%s3 + $0x8] sm:$0xff]
  %v539 = vld [vmem:[%s3 + $0x10] sm:$0xff]
  %v540 = vld [vmem:[%s3 + $0x18] sm:$0xff]
  %v541 = vld [vmem:[%s3 + $0x20] sm:$0xff]
  %v542 = vld [vmem:[%s3 + $0x28] sm:$0xff]
  %v543 = vld [vmem:[%s3 + $0x30] sm:$0xff]
  %v544 = vld [vmem:[%s3 + $0x38] sm:$0xff]
  %v545 = vld [vmem:[%s3 + $0x40] sm:$0xff]
  %v546 = vld [vmem:[%s3 + $0x48] sm:$0xff]
  %v547 = vld [vmem:[%s3 + $0x50] sm:$0xff]
  %v548 = vld [vmem:[%s3 + $0x58] sm:$0xff]
  %v549 = vld [vmem:[%s3 + $0x60] sm:$0xff]
  %v550 = vld [vmem:[%s3 + $0x68] sm:$0xff]
  %v551 = vld [vmem:[%s3 + $0x70] sm:$0xff]
  %v552 = vld [vmem:[%s3 + $0x78] sm:$0xff]
  %v553 = vpack.c.bf16 %v526, %v525
  %v554 = vpack.c.bf16 %v528, %v527
  %v555 = vpack.c.bf16 %v530, %v529
  %v556 = vpack.c.bf16 %v532, %v531
  %s557 = scalar_lea.vmem %s3, 128
  %v558 = vld [vmem:[%s557] sm:$0xff]
  %v559 = vld [vmem:[%s557 + $0x8] sm:$0xff]
  %v560 = vld [vmem:[%s557 + $0x10] sm:$0xff]
  %v561 = vld [vmem:[%s557 + $0x18] sm:$0xff]
  %v562 = vld [vmem:[%s557 + $0x20] sm:$0xff]
  %v563 = vld [vmem:[%s557 + $0x28] sm:$0xff]
  %v564 = vld [vmem:[%s557 + $0x30] sm:$0xff]
  %v565 = vld [vmem:[%s557 + $0x38] sm:$0xff]
  %v566 = vld [vmem:[%s557 + $0x40] sm:$0xff]
  %v567 = vld [vmem:[%s557 + $0x48] sm:$0xff]
  %v568 = vld [vmem:[%s557 + $0x50] sm:$0xff]
  %v569 = vld [vmem:[%s557 + $0x58] sm:$0xff]
  %v570 = vld [vmem:[%s557 + $0x60] sm:$0xff]
  %v571 = vld [vmem:[%s557 + $0x68] sm:$0xff]
  %v572 = vld [vmem:[%s557 + $0x70] sm:$0xff]
  %v573 = vld [vmem:[%s557 + $0x78] sm:$0xff]
  %v574 = vpack.c.bf16 %v527, %v526
  %v575 = vpack.c.bf16 %v529, %v528
  %v576 = vpack.c.bf16 %v531, %v530
  %v577 = vpack.c.bf16 %v533, %v532
  %v594 = vunpack.c.l.b16 %v558
  %v595 = vunpack.c.h.b16 %v558
  %v596 = vunpack.c.l.b16 %v559
  %v597 = vunpack.c.h.b16 %v559
  %v598 = vunpack.c.l.b16 %v560
  %v599 = vunpack.c.h.b16 %v560
  %v600 = vunpack.c.l.b16 %v561
  %v601 = vunpack.c.h.b16 %v561
  %v602 = vunpack.c.l.b16 %v562
  %v603 = vunpack.c.h.b16 %v562
  %v604 = vunpack.c.l.b16 %v563
  %v605 = vunpack.c.h.b16 %v563
  %v606 = vunpack.c.l.b16 %v564
  %v607 = vunpack.c.h.b16 %v564
  %v608 = vunpack.c.l.b16 %v565
  %v609 = vunpack.c.h.b16 %v565
  %v610 = vunpack.c.l.b16 %v566
  %v611 = vunpack.c.h.b16 %v566
  %v612 = vunpack.c.l.b16 %v567
  %v613 = vunpack.c.h.b16 %v567
  %v614 = vunpack.c.l.b16 %v568
  %v615 = vunpack.c.h.b16 %v568
  %v616 = vunpack.c.l.b16 %v569
  %v617 = vunpack.c.h.b16 %v569
  %v618 = vunpack.c.l.b16 %v570
  %v619 = vunpack.c.h.b16 %v570
  %v620 = vunpack.c.l.b16 %v571
  %v621 = vunpack.c.h.b16 %v571
  %v622 = vunpack.c.l.b16 %v572
  %v623 = vunpack.c.h.b16 %v572
  %v624 = vunpack.c.l.b16 %v573
  %v625 = vunpack.c.h.b16 %v573
  %v626 = vpack.c.b16 %v596, %v594
  %v627 = vpack.c.b16 %v597, %v595
  %v628 = vpack.c.b16 %v600, %v598
  %v629 = vpack.c.b16 %v601, %v599
  %v630 = vpack.c.b16 %v604, %v602
  %v631 = vpack.c.b16 %v605, %v603
  %v632 = vpack.c.b16 %v608, %v606
  %v633 = vpack.c.b16 %v609, %v607
  %v634 = vpack.c.b16 %v612, %v610
  %v635 = vpack.c.b16 %v613, %v611
  %v636 = vpack.c.b16 %v616, %v614
  %v637 = vpack.c.b16 %v617, %v615
  %v638 = vpack.c.b16 %v620, %v618
  %v639 = vpack.c.b16 %v621, %v619
  %v640 = vpack.c.b16 %v624, %v622
  %v641 = vpack.c.b16 %v625, %v623
  %658 = vmatprep.subr.bf16.mxu0 %v627
  %659 = vmatpush1.bf16.msra.mxu0 %v626
  %660 = vmatprep.subr.bf16.mxu0 %v629
  %661 = vmatpush1.bf16.msra.mxu0 %v628
  %662 = vmatprep.subr.bf16.mxu0 %v631
  %663 = vmatpush1.bf16.msra.mxu0 %v630
  %664 = vmatprep.subr.bf16.mxu0 %v633
  %665 = vmatpush1.bf16.msra.mxu0 %v632
  %666 = vmatprep.subr.bf16.mxu0 %v635
  %667 = vmatpush1.bf16.msra.mxu0 %v634
  %668 = vmatprep.subr.bf16.mxu0 %v637
  %669 = vmatpush1.bf16.msra.mxu0 %v636
  %670 = vmatprep.subr.bf16.mxu0 %v639
  %671 = vmatpush1.bf16.msra.mxu0 %v638
  %672 = vmatprep.subr.bf16.mxu0 %v641
  %673 = vmatpush1.bf16.msra.mxu0 %v640
  %674 = vmatprep.subr.bf16.mxu0 0
  %675 = vmatpush1.bf16.msra.mxu0 0
  %676 = vmatprep.subr.bf16.mxu0 0
  %677 = vmatpush1.bf16.msra.mxu0 0
  %678 = vmatprep.subr.bf16.mxu0 0
  %679 = vmatpush1.bf16.msra.mxu0 0
  %680 = vmatprep.subr.bf16.mxu0 0
  %681 = vmatpush1.bf16.msra.mxu0 0
  %682 = vmatprep.subr.bf16.mxu0 0
  %683 = vmatpush1.bf16.msra.mxu0 0
  %684 = vmatprep.subr.bf16.mxu0 0
  %685 = vmatpush1.bf16.msra.mxu0 0
  %686 = vmatprep.subr.bf16.mxu0 0
  %687 = vmatpush1.bf16.msra.mxu0 0
  %688 = vmatprep.subr.bf16.mxu0 0
  %689 = vmatpush1.bf16.msra.mxu0 0
  %690 = vmatprep.mubr.bf16.mxu0 0
  %691 = vmatmul.mubr.bf16.gmra.mrb[0].mxu0 %v574
  %v692 = vpop.f32.mrb[0].mxu0
  %v693 = vadd.f32 0.0, %v692
  %v694 = vpop.f32.mrb[0].mxu0
  %v695 = vadd.f32 0.0, %v694
  %v696 = vpop.f32.mrb[0].mxu0
  %v697 = vadd.f32 0.0, %v696
  %v698 = vpop.f32.mrb[0].mxu0
  %v699 = vadd.f32 0.0, %v698
  %700 = vmatprep.mubr.bf16.mxu0 0
  %701 = vmatmul.mubr.bf16.gmra.mrb[0].mxu0 %v575
  %v702 = vpop.f32.mrb[0].mxu0
  %v703 = vadd.f32 0.0, %v702
  %v704 = vpop.f32.mrb[0].mxu0
  %v705 = vadd.f32 0.0, %v704
  %v706 = vpop.f32.mrb[0].mxu0
  %v707 = vadd.f32 0.0, %v706
  %v708 = vpop.f32.mrb[0].mxu0
  %v709 = vadd.f32 0.0, %v708
  %710 = vmatprep.mubr.bf16.mxu0 0
  %711 = vmatmul.mubr.bf16.gmra.mrb[0].mxu0 %v576
  %v712 = vpop.f32.mrb[0].mxu0
  %v713 = vadd.f32 0.0, %v712
  %v714 = vpop.f32.mrb[0].mxu0
  %v715 = vadd.f32 0.0, %v714
  %v716 = vpop.f32.mrb[0].mxu0
  %v717 = vadd.f32 0.0, %v716
  %v718 = vpop.f32.mrb[0].mxu0
  %v719 = vadd.f32 0.0, %v718
  %720 = vmatprep.mubr.bf16.mxu0 0
  %721 = vmatmul.mubr.bf16.gmra.mrb[0].mxu0 %v577
  %v722 = vpop.f32.mrb[0].mxu0
  %v723 = vadd.f32 0.0, %v722
  %v724 = vpop.f32.mrb[0].mxu0
  %v725 = vadd.f32 0.0, %v724
  %v726 = vpop.f32.mrb[0].mxu0
  %v727 = vadd.f32 0.0, %v726
  %v728 = vpop.f32.mrb[0].mxu0
  %v729 = vadd.f32 0.0, %v728
  %730 = vdwg.mxu0
  %v747 = vunpack.c.l.b16 %v537
  %v748 = vunpack.c.h.b16 %v537
  %v749 = vunpack.c.l.b16 %v538
  %v750 = vunpack.c.h.b16 %v538
  %v751 = vunpack.c.l.b16 %v539
  %v752 = vunpack.c.h.b16 %v539
  %v753 = vunpack.c.l.b16 %v540
  %v754 = vunpack.c.h.b16 %v540
  %v755 = vunpack.c.l.b16 %v541
  %v756 = vunpack.c.h.b16 %v541
  %v757 = vunpack.c.l.b16 %v542
  %v758 = vunpack.c.h.b16 %v542
  %v759 = vunpack.c.l.b16 %v543
  %v760 = vunpack.c.h.b16 %v543
  %v761 = vunpack.c.l.b16 %v544
  %v762 = vunpack.c.h.b16 %v544
  %v763 = vunpack.c.l.b16 %v545
  %v764 = vunpack.c.h.b16 %v545
  %v765 = vunpack.c.l.b16 %v546
  %v766 = vunpack.c.h.b16 %v546
  %v767 = vunpack.c.l.b16 %v547
  %v768 = vunpack.c.h.b16 %v547
  %v769 = vunpack.c.l.b16 %v548
  %v770 = vunpack.c.h.b16 %v548
  %v771 = vunpack.c.l.b16 %v549
  %v772 = vunpack.c.h.b16 %v549
  %v773 = vunpack.c.l.b16 %v550
  %v774 = vunpack.c.h.b16 %v550
  %v775 = vunpack.c.l.b16 %v551
  %v776 = vunpack.c.h.b16 %v551
  %v777 = vunpack.c.l.b16 %v552
  %v778 = vunpack.c.h.b16 %v552
  %v779 = vpack.c.b16 %v749, %v747
  %v780 = vpack.c.b16 %v750, %v748
  %v781 = vpack.c.b16 %v753, %v751
  %v782 = vpack.c.b16 %v754, %v752
  %v783 = vpack.c.b16 %v757, %v755
  %v784 = vpack.c.b16 %v758, %v756
  %v785 = vpack.c.b16 %v761, %v759
  %v786 = vpack.c.b16 %v762, %v760
  %v787 = vpack.c.b16 %v765, %v763
  %v788 = vpack.c.b16 %v766, %v764
  %v789 = vpack.c.b16 %v769, %v767
  %v790 = vpack.c.b16 %v770, %v768
  %v791 = vpack.c.b16 %v773, %v771
  %v792 = vpack.c.b16 %v774, %v772
  %v793 = vpack.c.b16 %v777, %v775
  %v794 = vpack.c.b16 %v778, %v776
  %811 = vmatprep.subr.bf16.mxu0 %v780
  %812 = vmatpush1.bf16.msra.mxu0 %v779
  %813 = vmatprep.subr.bf16.mxu0 %v782
  %814 = vmatpush1.bf16.msra.mxu0 %v781
  %815 = vmatprep.subr.bf16.mxu0 %v784
  %816 = vmatpush1.bf16.msra.mxu0 %v783
  %817 = vmatprep.subr.bf16.mxu0 %v786
  %818 = vmatpush1.bf16.msra.mxu0 %v785
  %819 = vmatprep.subr.bf16.mxu0 %v788
  %820 = vmatpush1.bf16.msra.mxu0 %v787
  %821 = vmatprep.subr.bf16.mxu0 %v790
  %822 = vmatpush1.bf16.msra.mxu0 %v789
  %823 = vmatprep.subr.bf16.mxu0 %v792
  %824 = vmatpush1.bf16.msra.mxu0 %v791
  %825 = vmatprep.subr.bf16.mxu0 %v794
  %826 = vmatpush1.bf16.msra.mxu0 %v793
  %827 = vmatprep.subr.bf16.mxu0 0
  %828 = vmatpush1.bf16.msra.mxu0 0
  %829 = vmatprep.subr.bf16.mxu0 0
  %830 = vmatpush1.bf16.msra.mxu0 0
  %831 = vmatprep.subr.bf16.mxu0 0
  %832 = vmatpush1.bf16.msra.mxu0 0
  %833 = vmatprep.subr.bf16.mxu0 0
  %834 = vmatpush1.bf16.msra.mxu0 0
  %835 = vmatprep.subr.bf16.mxu0 0
  %836 = vmatpush1.bf16.msra.mxu0 0
  %837 = vmatprep.subr.bf16.mxu0 0
  %838 = vmatpush1.bf16.msra.mxu0 0
  %839 = vmatprep.subr.bf16.mxu0 0
  %840 = vmatpush1.bf16.msra.mxu0 0
  %841 = vmatprep.subr.bf16.mxu0 0
  %842 = vmatpush1.bf16.msra.mxu0 0
  %843 = vmatprep.mubr.bf16.mxu0 0
  %844 = vmatmul.mubr.bf16.gmra.mrb[0].mxu0 %v553
  %v845 = vpop.f32.mrb[0].mxu0
  %v846 = vadd.f32 %v693, %v845
  %v847 = vpop.f32.mrb[0].mxu0
  %v848 = vadd.f32 %v695, %v847
  %v849 = vpop.f32.mrb[0].mxu0
  %v850 = vadd.f32 %v697, %v849
  %v851 = vpop.f32.mrb[0].mxu0
  %v852 = vadd.f32 %v699, %v851
  %853 = vmatprep.mubr.bf16.mxu0 0
  %854 = vmatmul.mubr.bf16.gmra.mrb[0].mxu0 %v554
  %v855 = vpop.f32.mrb[0].mxu0
  %v856 = vadd.f32 %v703, %v855
  %v857 = vpop.f32.mrb[0].mxu0
  %v858 = vadd.f32 %v705, %v857
  %v859 = vpop.f32.mrb[0].mxu0
  %v860 = vadd.f32 %v707, %v859
  %v861 = vpop.f32.mrb[0].mxu0
  %v862 = vadd.f32 %v709, %v861
  %863 = vmatprep.mubr.bf16.mxu0 0
  %864 = vmatmul.mubr.bf16.gmra.mrb[0].mxu0 %v555
  %v865 = vpop.f32.mrb[0].mxu0
  %v866 = vadd.f32 %v713, %v865
  %v867 = vpop.f32.mrb[0].mxu0
  %v868 = vadd.f32 %v715, %v867
  %v869 = vpop.f32.mrb[0].mxu0
  %v870 = vadd.f32 %v717, %v869
  %v871 = vpop.f32.mrb[0].mxu0
  %v872 = vadd.f32 %v719, %v871
  %873 = vmatprep.mubr.bf16.mxu0 0
  %874 = vmatmul.mubr.bf16.gmra.mrb[0].mxu0 %v556
  %v875 = vpop.f32.mrb[0].mxu0
  %v876 = vadd.f32 %v723, %v875
  %v877 = vpop.f32.mrb[0].mxu0
  %v878 = vadd.f32 %v725, %v877
  %v879 = vpop.f32.mrb[0].mxu0
  %v880 = vadd.f32 %v727, %v879
  %v881 = vpop.f32.mrb[0].mxu0
  %v882 = vadd.f32 %v729, %v881
  %883 = vdwg.mxu0
  %s884 = scalar_lea.vmem %s3, 256
  %v885 = vld [vmem:[%s884] sm:$0xff]
  %v886 = vld [vmem:[%s884 + $0x8] sm:$0xff]
  %v887 = vld [vmem:[%s884 + $0x10] sm:$0xff]
  %v888 = vld [vmem:[%s884 + $0x18] sm:$0xff]
  %v889 = vld [vmem:[%s884 + $0x20] sm:$0xff]
  %v890 = vld [vmem:[%s884 + $0x28] sm:$0xff]
  %v891 = vld [vmem:[%s884 + $0x30] sm:$0xff]
  %v892 = vld [vmem:[%s884 + $0x38] sm:$0xff]
  %v893 = vld [vmem:[%s884 + $0x40] sm:$0xff]
  %v894 = vld [vmem:[%s884 + $0x48] sm:$0xff]
  %v895 = vld [vmem:[%s884 + $0x50] sm:$0xff]
  %v896 = vld [vmem:[%s884 + $0x58] sm:$0xff]
  %v897 = vld [vmem:[%s884 + $0x60] sm:$0xff]
  %v898 = vld [vmem:[%s884 + $0x68] sm:$0xff]
  %v899 = vld [vmem:[%s884 + $0x70] sm:$0xff]
  %v900 = vld [vmem:[%s884 + $0x78] sm:$0xff]
  %v901 = vpack.c.bf16 %v534, %v533
  %v918 = vunpack.c.l.b16 %v885
  %v919 = vunpack.c.h.b16 %v885
  %v920 = vunpack.c.l.b16 %v886
  %v921 = vunpack.c.h.b16 %v886
  %v922 = vunpack.c.l.b16 %v887
  %v923 = vunpack.c.h.b16 %v887
  %v924 = vunpack.c.l.b16 %v888
  %v925 = vunpack.c.h.b16 %v888
  %v926 = vunpack.c.l.b16 %v889
  %v927 = vunpack.c.h.b16 %v889
  %v928 = vunpack.c.l.b16 %v890
  %v929 = vunpack.c.h.b16 %v890
  %v930 = vunpack.c.l.b16 %v891
  %v931 = vunpack.c.h.b16 %v891
  %v932 = vunpack.c.l.b16 %v892
  %v933 = vunpack.c.h.b16 %v892
  %v934 = vunpack.c.l.b16 %v893
  %v935 = vunpack.c.h.b16 %v893
  %v936 = vunpack.c.l.b16 %v894
  %v937 = vunpack.c.h.b16 %v894
  %v938 = vunpack.c.l.b16 %v895
  %v939 = vunpack.c.h.b16 %v895
  %v940 = vunpack.c.l.b16 %v896
  %v941 = vunpack.c.h.b16 %v896
  %v942 = vunpack.c.l.b16 %v897
  %v943 = vunpack.c.h.b16 %v897
  %v944 = vunpack.c.l.b16 %v898
  %v945 = vunpack.c.h.b16 %v898
  %v946 = vunpack.c.l.b16 %v899
  %v947 = vunpack.c.h.b16 %v899
  %v948 = vunpack.c.l.b16 %v900
  %v949 = vunpack.c.h.b16 %v900
  %v950 = vpack.c.b16 %v920, %v918
  %v951 = vpack.c.b16 %v921, %v919
  %v952 = vpack.c.b16 %v924, %v922
  %v953 = vpack.c.b16 %v925, %v923
  %v954 = vpack.c.b16 %v928, %v926
  %v955 = vpack.c.b16 %v929, %v927
  %v956 = vpack.c.b16 %v932, %v930
  %v957 = vpack.c.b16 %v933, %v931
  %v958 = vpack.c.b16 %v936, %v934
  %v959 = vpack.c.b16 %v937, %v935
  %v960 = vpack.c.b16 %v940, %v938
  %v961 = vpack.c.b16 %v941, %v939
  %v962 = vpack.c.b16 %v944, %v942
  %v963 = vpack.c.b16 %v945, %v943
  %v964 = vpack.c.b16 %v948, %v946
  %v965 = vpack.c.b16 %v949, %v947
  %982 = vmatprep.subr.bf16.mxu0 %v951
  %983 = vmatpush1.bf16.msra.mxu0 %v950
  %984 = vmatprep.subr.bf16.mxu0 %v953
  %985 = vmatpush1.bf16.msra.mxu0 %v952
  %986 = vmatprep.subr.bf16.mxu0 %v955
  %987 = vmatpush1.bf16.msra.mxu0 %v954
  %988 = vmatprep.subr.bf16.mxu0 %v957
  %989 = vmatpush1.bf16.msra.mxu0 %v956
  %990 = vmatprep.subr.bf16.mxu0 %v959
  %991 = vmatpush1.bf16.msra.mxu0 %v958
  %992 = vmatprep.subr.bf16.mxu0 %v961
  %993 = vmatpush1.bf16.msra.mxu0 %v960
  %994 = vmatprep.subr.bf16.mxu0 %v963
  %995 = vmatpush1.bf16.msra.mxu0 %v962
  %996 = vmatprep.subr.bf16.mxu0 %v965
  %997 = vmatpush1.bf16.msra.mxu0 %v964
  %998 = vmatprep.subr.bf16.mxu0 0
  %999 = vmatpush1.bf16.msra.mxu0 0
  %1000 = vmatprep.subr.bf16.mxu0 0
  %1001 = vmatpush1.bf16.msra.mxu0 0
  %1002 = vmatprep.subr.bf16.mxu0 0
  %1003 = vmatpush1.bf16.msra.mxu0 0
  %1004 = vmatprep.subr.bf16.mxu0 0
  %1005 = vmatpush1.bf16.msra.mxu0 0
  %1006 = vmatprep.subr.bf16.mxu0 0
  %1007 = vmatpush1.bf16.msra.mxu0 0
  %1008 = vmatprep.subr.bf16.mxu0 0
  %1009 = vmatpush1.bf16.msra.mxu0 0
  %1010 = vmatprep.subr.bf16.mxu0 0
  %1011 = vmatpush1.bf16.msra.mxu0 0
  %1012 = vmatprep.subr.bf16.mxu0 0
  %1013 = vmatpush1.bf16.msra.mxu0 0
  %1014 = vmatprep.mubr.bf16.mxu0 0
  %1015 = vmatmul.mubr.bf16.gmra.mrb[0].mxu0 %v554
  %v1016 = vpop.f32.mrb[0].mxu0
  %v1017 = vadd.f32 0.0, %v1016
  %v1018 = vpop.f32.mrb[0].mxu0
  %v1019 = vadd.f32 0.0, %v1018
  %v1020 = vpop.f32.mrb[0].mxu0
  %v1021 = vadd.f32 0.0, %v1020
  %v1022 = vpop.f32.mrb[0].mxu0
  %v1023 = vadd.f32 0.0, %v1022
  %1024 = vmatprep.mubr.bf16.mxu0 0
  %1025 = vmatmul.mubr.bf16.gmra.mrb[0].mxu0 %v555
  %v1026 = vpop.f32.mrb[0].mxu0
  %v1027 = vadd.f32 0.0, %v1026
  %v1028 = vpop.f32.mrb[0].mxu0
  %v1029 = vadd.f32 0.0, %v1028
  %v1030 = vpop.f32.mrb[0].mxu0
  %v1031 = vadd.f32 0.0, %v1030
  %v1032 = vpop.f32.mrb[0].mxu0
  %v1033 = vadd.f32 0.0, %v1032
  %1034 = vmatprep.mubr.bf16.mxu0 0
  %1035 = vmatmul.mubr.bf16.gmra.mrb[0].mxu0 %v556
  %v1036 = vpop.f32.mrb[0].mxu0
  %v1037 = vadd.f32 0.0, %v1036
  %v1038 = vpop.f32.mrb[0].mxu0
  %v1039 = vadd.f32 0.0, %v1038
  %v1040 = vpop.f32.mrb[0].mxu0
  %v1041 = vadd.f32 0.0, %v1040
  %v1042 = vpop.f32.mrb[0].mxu0
  %v1043 = vadd.f32 0.0, %v1042
  %1044 = vmatprep.mubr.bf16.mxu0 0
  %1045 = vmatmul.mubr.bf16.gmra.mrb[0].mxu0 %v901
  %v1046 = vpop.f32.mrb[0].mxu0
  %v1047 = vadd.f32 0.0, %v1046
  %v1048 = vpop.f32.mrb[0].mxu0
  %v1049 = vadd.f32 0.0, %v1048
  %v1050 = vpop.f32.mrb[0].mxu0
  %v1051 = vadd.f32 0.0, %v1050
  %v1052 = vpop.f32.mrb[0].mxu0
  %v1053 = vadd.f32 0.0, %v1052
  %1054 = vdwg.mxu0
  %v1055 = vadd.f32 %v846, %v1017
  %v1056 = vadd.f32 %v848, %v1019
  %v1057 = vadd.f32 %v850, %v1021
  %v1058 = vadd.f32 %v852, %v1023
  %v1059 = vadd.f32 %v856, %v1027
  %v1060 = vadd.f32 %v858, %v1029
  %v1061 = vadd.f32 %v860, %v1031
  %v1062 = vadd.f32 %v862, %v1033
  %v1063 = vadd.f32 %v866, %v1037
  %v1064 = vadd.f32 %v868, %v1039
  %v1065 = vadd.f32 %v870, %v1041
  %v1066 = vadd.f32 %v872, %v1043
  %v1067 = vadd.f32 %v876, %v1047
  %v1068 = vadd.f32 %v878, %v1049
  %v1069 = vadd.f32 %v880, %v1051
  %v1070 = vadd.f32 %v882, %v1053
  %s1071 = scalar_lea.vmem %s3, 384
  %v1072 = vld [vmem:[%s1071] sm:$0xff]
  %v1073 = vld [vmem:[%s1071 + $0x8] sm:$0xff]
  %v1074 = vld [vmem:[%s1071 + $0x10] sm:$0xff]
  %v1075 = vld [vmem:[%s1071 + $0x18] sm:$0xff]
  %v1076 = vld [vmem:[%s1071 + $0x20] sm:$0xff]
  %v1077 = vld [vmem:[%s1071 + $0x28] sm:$0xff]
  %v1078 = vld [vmem:[%s1071 + $0x30] sm:$0xff]
  %v1079 = vld [vmem:[%s1071 + $0x38] sm:$0xff]
  %v1080 = vld [vmem:[%s1071 + $0x40] sm:$0xff]
  %v1081 = vld [vmem:[%s1071 + $0x48] sm:$0xff]
  %v1082 = vld [vmem:[%s1071 + $0x50] sm:$0xff]
  %v1083 = vld [vmem:[%s1071 + $0x58] sm:$0xff]
  %v1084 = vld [vmem:[%s1071 + $0x60] sm:$0xff]
  %v1085 = vld [vmem:[%s1071 + $0x68] sm:$0xff]
  %v1086 = vld [vmem:[%s1071 + $0x70] sm:$0xff]
  %v1087 = vld [vmem:[%s1071 + $0x78] sm:$0xff]
  %v1088 = vpack.c.bf16 %v535, %v534
  %v1105 = vunpack.c.l.b16 %v1072
  %v1106 = vunpack.c.h.b16 %v1072
  %v1107 = vunpack.c.l.b16 %v1073
  %v1108 = vunpack.c.h.b16 %v1073
  %v1109 = vunpack.c.l.b16 %v1074
  %v1110 = vunpack.c.h.b16 %v1074
  %v1111 = vunpack.c.l.b16 %v1075
  %v1112 = vunpack.c.h.b16 %v1075
  %v1113 = vunpack.c.l.b16 %v1076
  %v1114 = vunpack.c.h.b16 %v1076
  %v1115 = vunpack.c.l.b16 %v1077
  %v1116 = vunpack.c.h.b16 %v1077
  %v1117 = vunpack.c.l.b16 %v1078
  %v1118 = vunpack.c.h.b16 %v1078
  %v1119 = vunpack.c.l.b16 %v1079
  %v1120 = vunpack.c.h.b16 %v1079
  %v1121 = vunpack.c.l.b16 %v1080
  %v1122 = vunpack.c.h.b16 %v1080
  %v1123 = vunpack.c.l.b16 %v1081
  %v1124 = vunpack.c.h.b16 %v1081
  %v1125 = vunpack.c.l.b16 %v1082
  %v1126 = vunpack.c.h.b16 %v1082
  %v1127 = vunpack.c.l.b16 %v1083
  %v1128 = vunpack.c.h.b16 %v1083
  %v1129 = vunpack.c.l.b16 %v1084
  %v1130 = vunpack.c.h.b16 %v1084
  %v1131 = vunpack.c.l.b16 %v1085
  %v1132 = vunpack.c.h.b16 %v1085
  %v1133 = vunpack.c.l.b16 %v1086
  %v1134 = vunpack.c.h.b16 %v1086
  %v1135 = vunpack.c.l.b16 %v1087
  %v1136 = vunpack.c.h.b16 %v1087
  %v1137 = vpack.c.b16 %v1107, %v1105
  %v1138 = vpack.c.b16 %v1108, %v1106
  %v1139 = vpack.c.b16 %v1111, %v1109
  %v1140 = vpack.c.b16 %v1112, %v1110
  %v1141 = vpack.c.b16 %v1115, %v1113
  %v1142 = vpack.c.b16 %v1116, %v1114
  %v1143 = vpack.c.b16 %v1119, %v1117
  %v1144 = vpack.c.b16 %v1120, %v1118
  %v1145 = vpack.c.b16 %v1123, %v1121
  %v1146 = vpack.c.b16 %v1124, %v1122
  %v1147 = vpack.c.b16 %v1127, %v1125
  %v1148 = vpack.c.b16 %v1128, %v1126
  %v1149 = vpack.c.b16 %v1131, %v1129
  %v1150 = vpack.c.b16 %v1132, %v1130
  %v1151 = vpack.c.b16 %v1135, %v1133
  %v1152 = vpack.c.b16 %v1136, %v1134
  %1169 = vmatprep.subr.bf16.mxu0 %v1138
  %1170 = vmatpush1.bf16.msra.mxu0 %v1137
  %1171 = vmatprep.subr.bf16.mxu0 %v1140
  %1172 = vmatpush1.bf16.msra.mxu0 %v1139
  %1173 = vmatprep.subr.bf16.mxu0 %v1142
  %1174 = vmatpush1.bf16.msra.mxu0 %v1141
  %1175 = vmatprep.subr.bf16.mxu0 %v1144
  %1176 = vmatpush1.bf16.msra.mxu0 %v1143
  %1177 = vmatprep.subr.bf16.mxu0 %v1146
  %1178 = vmatpush1.bf16.msra.mxu0 %v1145
  %1179 = vmatprep.subr.bf16.mxu0 %v1148
  %1180 = vmatpush1.bf16.msra.mxu0 %v1147
  %1181 = vmatprep.subr.bf16.mxu0 %v1150
  %1182 = vmatpush1.bf16.msra.mxu0 %v1149
  %1183 = vmatprep.subr.bf16.mxu0 %v1152
  %1184 = vmatpush1.bf16.msra.mxu0 %v1151
  %1185 = vmatprep.subr.bf16.mxu0 0
  %1186 = vmatpush1.bf16.msra.mxu0 0
  %1187 = vmatprep.subr.bf16.mxu0 0
  %1188 = vmatpush1.bf16.msra.mxu0 0
  %1189 = vmatprep.subr.bf16.mxu0 0
  %1190 = vmatpush1.bf16.msra.mxu0 0
  %1191 = vmatprep.subr.bf16.mxu0 0
  %1192 = vmatpush1.bf16.msra.mxu0 0
  %1193 = vmatprep.subr.bf16.mxu0 0
  %1194 = vmatpush1.bf16.msra.mxu0 0
  %1195 = vmatprep.subr.bf16.mxu0 0
  %1196 = vmatpush1.bf16.msra.mxu0 0
  %1197 = vmatprep.subr.bf16.mxu0 0
  %1198 = vmatpush1.bf16.msra.mxu0 0
  %1199 = vmatprep.subr.bf16.mxu0 0
  %1200 = vmatpush1.bf16.msra.mxu0 0
  %1201 = vmatprep.mubr.bf16.mxu0 0
  %1202 = vmatmul.mubr.bf16.gmra.mrb[0].mxu0 %v575
  %v1203 = vpop.f32.mrb[0].mxu0
  %v1204 = vadd.f32 0.0, %v1203
  %v1205 = vpop.f32.mrb[0].mxu0
  %v1206 = vadd.f32 0.0, %v1205
  %v1207 = vpop.f32.mrb[0].mxu0
  %v1208 = vadd.f32 0.0, %v1207
  %v1209 = vpop.f32.mrb[0].mxu0
  %v1210 = vadd.f32 0.0, %v1209
  %1211 = vmatprep.mubr.bf16.mxu0 0
  %1212 = vmatmul.mubr.bf16.gmra.mrb[0].mxu0 %v576
  %v1213 = vpop.f32.mrb[0].mxu0
  %v1214 = vadd.f32 0.0, %v1213
  %v1215 = vpop.f32.mrb[0].mxu0
  %v1216 = vadd.f32 0.0, %v1215
  %v1217 = vpop.f32.mrb[0].mxu0
  %v1218 = vadd.f32 0.0, %v1217
  %v1219 = vpop.f32.mrb[0].mxu0
  %v1220 = vadd.f32 0.0, %v1219
  %1221 = vmatprep.mubr.bf16.mxu0 0
  %1222 = vmatmul.mubr.bf16.gmra.mrb[0].mxu0 %v577
  %v1223 = vpop.f32.mrb[0].mxu0
  %v1224 = vadd.f32 0.0, %v1223
  %v1225 = vpop.f32.mrb[0].mxu0
  %v1226 = vadd.f32 0.0, %v1225
  %v1227 = vpop.f32.mrb[0].mxu0
  %v1228 = vadd.f32 0.0, %v1227
  %v1229 = vpop.f32.mrb[0].mxu0
  %v1230 = vadd.f32 0.0, %v1229
  %1231 = vmatprep.mubr.bf16.mxu0 0
  %1232 = vmatmul.mubr.bf16.gmra.mrb[0].mxu0 %v1088
  %v1233 = vpop.f32.mrb[0].mxu0
  %v1234 = vadd.f32 0.0, %v1233
  %v1235 = vpop.f32.mrb[0].mxu0
  %v1236 = vadd.f32 0.0, %v1235
  %v1237 = vpop.f32.mrb[0].mxu0
  %v1238 = vadd.f32 0.0, %v1237
  %v1239 = vpop.f32.mrb[0].mxu0
  %v1240 = vadd.f32 0.0, %v1239
  %1241 = vdwg.mxu0
  %v1242 = vadd.f32 %v1055, %v1204
  %v1243 = vadd.f32 %v1056, %v1206
  %v1244 = vadd.f32 %v1057, %v1208
  %v1245 = vadd.f32 %v1058, %v1210
  %v1246 = vadd.f32 %v1059, %v1214
  %v1247 = vadd.f32 %v1060, %v1216
  %v1248 = vadd.f32 %v1061, %v1218
  %v1249 = vadd.f32 %v1062, %v1220
  %v1250 = vadd.f32 %v1063, %v1224
  %v1251 = vadd.f32 %v1064, %v1226
  %v1252 = vadd.f32 %v1065, %v1228
  %v1253 = vadd.f32 %v1066, %v1230
  %v1254 = vadd.f32 %v1067, %v1234
  %v1255 = vadd.f32 %v1068, %v1236
  %v1256 = vadd.f32 %v1069, %v1238
  %v1257 = vadd.f32 %v1070, %v1240
  %s1258 = scalar_lea.vmem %s3, 512
  %v1259 = vld [vmem:[%s1258] sm:$0xff]
  %v1260 = vld [vmem:[%s1258 + $0x8] sm:$0xff]
  %v1261 = vld [vmem:[%s1258 + $0x10] sm:$0xff]
  %v1262 = vld [vmem:[%s1258 + $0x18] sm:$0xff]
  %v1263 = vld [vmem:[%s1258 + $0x20] sm:$0xff]
  %v1264 = vld [vmem:[%s1258 + $0x28] sm:$0xff]
  %v1265 = vld [vmem:[%s1258 + $0x30] sm:$0xff]
  %v1266 = vld [vmem:[%s1258 + $0x38] sm:$0xff]
  %v1267 = vld [vmem:[%s1258 + $0x40] sm:$0xff]
  %v1268 = vld [vmem:[%s1258 + $0x48] sm:$0xff]
  %v1269 = vld [vmem:[%s1258 + $0x50] sm:$0xff]
  %v1270 = vld [vmem:[%s1258 + $0x58] sm:$0xff]
  %v1271 = vld [vmem:[%s1258 + $0x60] sm:$0xff]
  %v1272 = vld [vmem:[%s1258 + $0x68] sm:$0xff]
  %v1273 = vld [vmem:[%s1258 + $0x70] sm:$0xff]
  %v1274 = vld [vmem:[%s1258 + $0x78] sm:$0xff]
  %v1275 = vpack.c.bf16 %v536, %v535
  %v1292 = vunpack.c.l.b16 %v1259
  %v1293 = vunpack.c.h.b16 %v1259
  %v1294 = vunpack.c.l.b16 %v1260
  %v1295 = vunpack.c.h.b16 %v1260
  %v1296 = vunpack.c.l.b16 %v1261
  %v1297 = vunpack.c.h.b16 %v1261
  %v1298 = vunpack.c.l.b16 %v1262
  %v1299 = vunpack.c.h.b16 %v1262
  %v1300 = vunpack.c.l.b16 %v1263
  %v1301 = vunpack.c.h.b16 %v1263
  %v1302 = vunpack.c.l.b16 %v1264
  %v1303 = vunpack.c.h.b16 %v1264
  %v1304 = vunpack.c.l.b16 %v1265
  %v1305 = vunpack.c.h.b16 %v1265
  %v1306 = vunpack.c.l.b16 %v1266
  %v1307 = vunpack.c.h.b16 %v1266
  %v1308 = vunpack.c.l.b16 %v1267
  %v1309 = vunpack.c.h.b16 %v1267
  %v1310 = vunpack.c.l.b16 %v1268
  %v1311 = vunpack.c.h.b16 %v1268
  %v1312 = vunpack.c.l.b16 %v1269
  %v1313 = vunpack.c.h.b16 %v1269
  %v1314 = vunpack.c.l.b16 %v1270
  %v1315 = vunpack.c.h.b16 %v1270
  %v1316 = vunpack.c.l.b16 %v1271
  %v1317 = vunpack.c.h.b16 %v1271
  %v1318 = vunpack.c.l.b16 %v1272
  %v1319 = vunpack.c.h.b16 %v1272
  %v1320 = vunpack.c.l.b16 %v1273
  %v1321 = vunpack.c.h.b16 %v1273
  %v1322 = vunpack.c.l.b16 %v1274
  %v1323 = vunpack.c.h.b16 %v1274
  %v1324 = vpack.c.b16 %v1294, %v1292
  %v1325 = vpack.c.b16 %v1295, %v1293
  %v1326 = vpack.c.b16 %v1298, %v1296
  %v1327 = vpack.c.b16 %v1299, %v1297
  %v1328 = vpack.c.b16 %v1302, %v1300
  %v1329 = vpack.c.b16 %v1303, %v1301
  %v1330 = vpack.c.b16 %v1306, %v1304
  %v1331 = vpack.c.b16 %v1307, %v1305
  %v1332 = vpack.c.b16 %v1310, %v1308
  %v1333 = vpack.c.b16 %v1311, %v1309
  %v1334 = vpack.c.b16 %v1314, %v1312
  %v1335 = vpack.c.b16 %v1315, %v1313
  %v1336 = vpack.c.b16 %v1318, %v1316
  %v1337 = vpack.c.b16 %v1319, %v1317
  %v1338 = vpack.c.b16 %v1322, %v1320
  %v1339 = vpack.c.b16 %v1323, %v1321
  %1356 = vmatprep.subr.bf16.mxu0 %v1325
  %1357 = vmatpush1.bf16.msra.mxu0 %v1324
  %1358 = vmatprep.subr.bf16.mxu0 %v1327
  %1359 = vmatpush1.bf16.msra.mxu0 %v1326
  %1360 = vmatprep.subr.bf16.mxu0 %v1329
  %1361 = vmatpush1.bf16.msra.mxu0 %v1328
  %1362 = vmatprep.subr.bf16.mxu0 %v1331
  %1363 = vmatpush1.bf16.msra.mxu0 %v1330
  %1364 = vmatprep.subr.bf16.mxu0 %v1333
  %1365 = vmatpush1.bf16.msra.mxu0 %v1332
  %1366 = vmatprep.subr.bf16.mxu0 %v1335
  %1367 = vmatpush1.bf16.msra.mxu0 %v1334
  %1368 = vmatprep.subr.bf16.mxu0 %v1337
  %1369 = vmatpush1.bf16.msra.mxu0 %v1336
  %1370 = vmatprep.subr.bf16.mxu0 %v1339
  %1371 = vmatpush1.bf16.msra.mxu0 %v1338
  %1372 = vmatprep.subr.bf16.mxu0 0
  %1373 = vmatpush1.bf16.msra.mxu0 0
  %1374 = vmatprep.subr.bf16.mxu0 0
  %1375 = vmatpush1.bf16.msra.mxu0 0
  %1376 = vmatprep.subr.bf16.mxu0 0
  %1377 = vmatpush1.bf16.msra.mxu0 0
  %1378 = vmatprep.subr.bf16.mxu0 0
  %1379 = vmatpush1.bf16.msra.mxu0 0
  %1380 = vmatprep.subr.bf16.mxu0 0
  %1381 = vmatpush1.bf16.msra.mxu0 0
  %1382 = vmatprep.subr.bf16.mxu0 0
  %1383 = vmatpush1.bf16.msra.mxu0 0
  %1384 = vmatprep.subr.bf16.mxu0 0
  %1385 = vmatpush1.bf16.msra.mxu0 0
  %1386 = vmatprep.subr.bf16.mxu0 0
  %1387 = vmatpush1.bf16.msra.mxu0 0
  %1388 = vmatprep.mubr.bf16.mxu0 0
  %1389 = vmatmul.mubr.bf16.gmra.mrb[0].mxu0 %v555
  %v1390 = vpop.f32.mrb[0].mxu0
  %v1391 = vadd.f32 0.0, %v1390
  %v1392 = vpop.f32.mrb[0].mxu0
  %v1393 = vadd.f32 0.0, %v1392
  %v1394 = vpop.f32.mrb[0].mxu0
  %v1395 = vadd.f32 0.0, %v1394
  %v1396 = vpop.f32.mrb[0].mxu0
  %v1397 = vadd.f32 0.0, %v1396
  %1398 = vmatprep.mubr.bf16.mxu0 0
  %1399 = vmatmul.mubr.bf16.gmra.mrb[0].mxu0 %v556
  %v1400 = vpop.f32.mrb[0].mxu0
  %v1401 = vadd.f32 0.0, %v1400
  %v1402 = vpop.f32.mrb[0].mxu0
  %v1403 = vadd.f32 0.0, %v1402
  %v1404 = vpop.f32.mrb[0].mxu0
  %v1405 = vadd.f32 0.0, %v1404
  %v1406 = vpop.f32.mrb[0].mxu0
  %v1407 = vadd.f32 0.0, %v1406
  %1408 = vmatprep.mubr.bf16.mxu0 0
  %1409 = vmatmul.mubr.bf16.gmra.mrb[0].mxu0 %v901
  %v1410 = vpop.f32.mrb[0].mxu0
  %v1411 = vadd.f32 0.0, %v1410
  %v1412 = vpop.f32.mrb[0].mxu0
  %v1413 = vadd.f32 0.0, %v1412
  %v1414 = vpop.f32.mrb[0].mxu0
  %v1415 = vadd.f32 0.0, %v1414
  %v1416 = vpop.f32.mrb[0].mxu0
  %v1417 = vadd.f32 0.0, %v1416
  %1418 = vmatprep.mubr.bf16.mxu0 0
  %1419 = vmatmul.mubr.bf16.gmra.mrb[0].mxu0 %v1275
  %v1420 = vpop.f32.mrb[0].mxu0
  %v1421 = vadd.f32 0.0, %v1420
  %v1422 = vpop.f32.mrb[0].mxu0
  %v1423 = vadd.f32 0.0, %v1422
  %v1424 = vpop.f32.mrb[0].mxu0
  %v1425 = vadd.f32 0.0, %v1424
  %v1426 = vpop.f32.mrb[0].mxu0
  %v1427 = vadd.f32 0.0, %v1426
  %1428 = vdwg.mxu0
  %v1429 = vadd.f32 %v1242, %v1391
  %v1430 = vadd.f32 %v1243, %v1393
  %v1431 = vadd.f32 %v1244, %v1395
  %v1432 = vadd.f32 %v1245, %v1397
  %v1433 = vadd.f32 %v1246, %v1401
  %v1434 = vadd.f32 %v1247, %v1403
  %v1435 = vadd.f32 %v1248, %v1405
  %v1436 = vadd.f32 %v1249, %v1407
  %v1437 = vadd.f32 %v1250, %v1411
  %v1438 = vadd.f32 %v1251, %v1413
  %v1439 = vadd.f32 %v1252, %v1415
  %v1440 = vadd.f32 %v1253, %v1417
  %v1441 = vadd.f32 %v1254, %v1421
  %v1442 = vadd.f32 %v1255, %v1423
  %v1443 = vadd.f32 %v1256, %v1425
  %v1444 = vadd.f32 %v1257, %v1427
  %v1445 = vmax.f32 %v1429, %v1430
  %v1446 = vmax.f32 %v1431, %v1432
  %v1447 = vmax.f32 %v1433, %v1434
  %v1448 = vmax.f32 %v1435, %v1436
  %v1449 = vmax.f32 %v1437, %v1438
  %v1450 = vmax.f32 %v1439, %v1440
  %v1451 = vmax.f32 %v1441, %v1442
  %v1452 = vmax.f32 %v1443, %v1444
  %v1453 = vld [vmem:[%s4] sm:$0x1]
  %v1455 = vlaneseq
  %v1456 = vshrl.u32 %v1455, 7
  %v1457 = vsub.s32 0, %v1456
  %v1458 = vrot.slane %v1453, %v1457
  %v1460 = vadd.f32 %v1445, %v1458
  %v1461 = vadd.f32 %v1446, %v1458
  %v1462 = vadd.f32 %v1447, %v1458
  %v1463 = vadd.f32 %v1448, %v1458
  %v1464 = vadd.f32 %v1449, %v1458
  %v1465 = vadd.f32 %v1450, %v1458
  %v1466 = vadd.f32 %v1451, %v1458
  %v1467 = vadd.f32 %v1452, %v1458
  %v1468 = vmax.f32 %v1460, 0.0
  %v1469 = vmax.f32 %v1461, 0.0
  %v1470 = vmax.f32 %v1462, 0.0
  %v1471 = vmax.f32 %v1463, 0.0
  %v1472 = vmax.f32 %v1464, 0.0
  %v1473 = vmax.f32 %v1465, 0.0
  %v1474 = vmax.f32 %v1466, 0.0
  %v1475 = vmax.f32 %v1467, 0.0
  %v1476 = vmax.f32 %v1468, %v1469
  %v1477 = vld [vmem:[%s5] sm:$0xf]
  %v1478 = vld [vmem:[%s5 + $0x4] sm:$0xf]
  %v1479 = vld [vmem:[%s5 + $0x8] sm:$0xf]
  %v1480 = vld [vmem:[%s5 + $0xc] sm:$0xf]
  %v1481 = vld [vmem:[%s5 + $0x10] sm:$0xf]
  %v1482 = vld [vmem:[%s5 + $0x14] sm:$0xf]
  %v1483 = vld [vmem:[%s5 + $0x18] sm:$0xf]
  %v1484 = vld [vmem:[%s5 + $0x1c] sm:$0xf]
  %v1485 = vld [vmem:[%s5 + $0x20] sm:$0xf]
  %v1486 = vld [vmem:[%s5 + $0x24] sm:$0xf]
  %v1487 = vld [vmem:[%s5 + $0x28] sm:$0xf]
  %v1488 = vld [vmem:[%s5 + $0x2c] sm:$0xf]
  %v1489 = vld [vmem:[%s5 + $0x30] sm:$0xf]
  %v1490 = vld [vmem:[%s5 + $0x34] sm:$0xf]
  %v1491 = vld [vmem:[%s5 + $0x38] sm:$0xf]
  %v1492 = vld [vmem:[%s5 + $0x3c] sm:$0xf]
  %v1493 = vpack.c.bf16 %v1476, %v1476
  %v1494 = vmax.f32 %v1470, %v1471
  %s1495 = scalar_lea.vmem %s5, 64
  %v1496 = vld [vmem:[%s1495] sm:$0xf]
  %v1497 = vld [vmem:[%s1495 + $0x4] sm:$0xf]
  %v1498 = vld [vmem:[%s1495 + $0x8] sm:$0xf]
  %v1499 = vld [vmem:[%s1495 + $0xc] sm:$0xf]
  %v1500 = vld [vmem:[%s1495 + $0x10] sm:$0xf]
  %v1501 = vld [vmem:[%s1495 + $0x14] sm:$0xf]
  %v1502 = vld [vmem:[%s1495 + $0x18] sm:$0xf]
  %v1503 = vld [vmem:[%s1495 + $0x1c] sm:$0xf]
  %v1504 = vld [vmem:[%s1495 + $0x20] sm:$0xf]
  %v1505 = vld [vmem:[%s1495 + $0x24] sm:$0xf]
  %v1506 = vld [vmem:[%s1495 + $0x28] sm:$0xf]
  %v1507 = vld [vmem:[%s1495 + $0x2c] sm:$0xf]
  %v1508 = vld [vmem:[%s1495 + $0x30] sm:$0xf]
  %v1509 = vld [vmem:[%s1495 + $0x34] sm:$0xf]
  %v1510 = vld [vmem:[%s1495 + $0x38] sm:$0xf]
  %v1511 = vld [vmem:[%s1495 + $0x3c] sm:$0xf]
  %v1512 = vpack.c.bf16 %v1494, %v1494
  %v1529 = vunpack.c.l.b16 %v1496
  %v1530 = vunpack.c.l.b16 %v1497
  %v1531 = vunpack.c.l.b16 %v1498
  %v1532 = vunpack.c.l.b16 %v1499
  %v1533 = vunpack.c.l.b16 %v1500
  %v1534 = vunpack.c.l.b16 %v1501
  %v1535 = vunpack.c.l.b16 %v1502
  %v1536 = vunpack.c.l.b16 %v1503
  %v1537 = vunpack.c.l.b16 %v1504
  %v1538 = vunpack.c.l.b16 %v1505
  %v1539 = vunpack.c.l.b16 %v1506
  %v1540 = vunpack.c.l.b16 %v1507
  %v1541 = vunpack.c.l.b16 %v1508
  %v1542 = vunpack.c.l.b16 %v1509
  %v1543 = vunpack.c.l.b16 %v1510
  %v1544 = vunpack.c.l.b16 %v1511
  %v1545 = vpack.c.b16 %v1530, %v1529
  %v1546 = vpack.c.b16 %v1532, %v1531
  %v1547 = vpack.c.b16 %v1534, %v1533
  %v1548 = vpack.c.b16 %v1536, %v1535
  %v1549 = vpack.c.b16 %v1538, %v1537
  %v1550 = vpack.c.b16 %v1540, %v1539
  %v1551 = vpack.c.b16 %v1542, %v1541
  %v1552 = vpack.c.b16 %v1544, %v1543
  %1561 = vmatprep.subr.bf16.mxu0 0
  %1562 = vmatpush1.bf16.msra.mxu0 %v1545
  %1563 = vmatprep.subr.bf16.mxu0 0
  %1564 = vmatpush1.bf16.msra.mxu0 %v1546
  %1565 = vmatprep.subr.bf16.mxu0 0
  %1566 = vmatpush1.bf16.msra.mxu0 %v1547
  %1567 = vmatprep.subr.bf16.mxu0 0
  %1568 = vmatpush1.bf16.msra.mxu0 %v1548
  %1569 = vmatprep.subr.bf16.mxu0 0
  %1570 = vmatpush1.bf16.msra.mxu0 %v1549
  %1571 = vmatprep.subr.bf16.mxu0 0
  %1572 = vmatpush1.bf16.msra.mxu0 %v1550
  %1573 = vmatprep.subr.bf16.mxu0 0
  %1574 = vmatpush1.bf16.msra.mxu0 %v1551
  %1575 = vmatprep.subr.bf16.mxu0 0
  %1576 = vmatpush1.bf16.msra.mxu0 %v1552
  %1577 = vmatprep.subr.bf16.mxu0 0
  %1578 = vmatpush1.bf16.msra.mxu0 0
  %1579 = vmatprep.subr.bf16.mxu0 0
  %1580 = vmatpush1.bf16.msra.mxu0 0
  %1581 = vmatprep.subr.bf16.mxu0 0
  %1582 = vmatpush1.bf16.msra.mxu0 0
  %1583 = vmatprep.subr.bf16.mxu0 0
  %1584 = vmatpush1.bf16.msra.mxu0 0
  %1585 = vmatprep.subr.bf16.mxu0 0
  %1586 = vmatpush1.bf16.msra.mxu0 0
  %1587 = vmatprep.subr.bf16.mxu0 0
  %1588 = vmatpush1.bf16.msra.mxu0 0
  %1589 = vmatprep.subr.bf16.mxu0 0
  %1590 = vmatpush1.bf16.msra.mxu0 0
  %1591 = vmatprep.subr.bf16.mxu0 0
  %1592 = vmatpush1.bf16.msra.mxu0 0
  %1593 = vmatprep.mubr.bf16.mxu0 0
  %1594 = vmatmul.mubr.bf16.gmra.mrb[0].mxu0 %v1512
  %v1595 = vpop.f32.mrb[0].mxu0
  %v1596 = vadd.f32 0.0, %v1595
  %v1597 = vpop.f32.mrb[0].mxu0
  %v1598 = vpop.f32.mrb[0].mxu0
  %v1599 = vpop.f32.mrb[0].mxu0
  %1600 = vdwg.mxu0
  %v1617 = vunpack.c.l.b16 %v1477
  %v1618 = vunpack.c.l.b16 %v1478
  %v1619 = vunpack.c.l.b16 %v1479
  %v1620 = vunpack.c.l.b16 %v1480
  %v1621 = vunpack.c.l.b16 %v1481
  %v1622 = vunpack.c.l.b16 %v1482
  %v1623 = vunpack.c.l.b16 %v1483
  %v1624 = vunpack.c.l.b16 %v1484
  %v1625 = vunpack.c.l.b16 %v1485
  %v1626 = vunpack.c.l.b16 %v1486
  %v1627 = vunpack.c.l.b16 %v1487
  %v1628 = vunpack.c.l.b16 %v1488
  %v1629 = vunpack.c.l.b16 %v1489
  %v1630 = vunpack.c.l.b16 %v1490
  %v1631 = vunpack.c.l.b16 %v1491
  %v1632 = vunpack.c.l.b16 %v1492
  %v1633 = vpack.c.b16 %v1618, %v1617
  %v1634 = vpack.c.b16 %v1620, %v1619
  %v1635 = vpack.c.b16 %v1622, %v1621
  %v1636 = vpack.c.b16 %v1624, %v1623
  %v1637 = vpack.c.b16 %v1626, %v1625
  %v1638 = vpack.c.b16 %v1628, %v1627
  %v1639 = vpack.c.b16 %v1630, %v1629
  %v1640 = vpack.c.b16 %v1632, %v1631
  %1649 = vmatprep.subr.bf16.mxu0 0
  %1650 = vmatpush1.bf16.msra.mxu0 %v1633
  %1651 = vmatprep.subr.bf16.mxu0 0
  %1652 = vmatpush1.bf16.msra.mxu0 %v1634
  %1653 = vmatprep.subr.bf16.mxu0 0
  %1654 = vmatpush1.bf16.msra.mxu0 %v1635
  %1655 = vmatprep.subr.bf16.mxu0 0
  %1656 = vmatpush1.bf16.msra.mxu0 %v1636
  %1657 = vmatprep.subr.bf16.mxu0 0
  %1658 = vmatpush1.bf16.msra.mxu0 %v1637
  %1659 = vmatprep.subr.bf16.mxu0 0
  %1660 = vmatpush1.bf16.msra.mxu0 %v1638
  %1661 = vmatprep.subr.bf16.mxu0 0
  %1662 = vmatpush1.bf16.msra.mxu0 %v1639
  %1663 = vmatprep.subr.bf16.mxu0 0
  %1664 = vmatpush1.bf16.msra.mxu0 %v1640
  %1665 = vmatprep.subr.bf16.mxu0 0
  %1666 = vmatpush1.bf16.msra.mxu0 0
  %1667 = vmatprep.subr.bf16.mxu0 0
  %1668 = vmatpush1.bf16.msra.mxu0 0
  %1669 = vmatprep.subr.bf16.mxu0 0
  %1670 = vmatpush1.bf16.msra.mxu0 0
  %1671 = vmatprep.subr.bf16.mxu0 0
  %1672 = vmatpush1.bf16.msra.mxu0 0
  %1673 = vmatprep.subr.bf16.mxu0 0
  %1674 = vmatpush1.bf16.msra.mxu0 0
  %1675 = vmatprep.subr.bf16.mxu0 0
  %1676 = vmatpush1.bf16.msra.mxu0 0
  %1677 = vmatprep.subr.bf16.mxu0 0
  %1678 = vmatpush1.bf16.msra.mxu0 0
  %1679 = vmatprep.subr.bf16.mxu0 0
  %1680 = vmatpush1.bf16.msra.mxu0 0
  %1681 = vmatprep.mubr.bf16.mxu0 0
  %1682 = vmatmul.mubr.bf16.gmra.mrb[0].mxu0 %v1493
  %v1683 = vpop.f32.mrb[0].mxu0
  %v1684 = vadd.f32 %v1596, %v1683
  %v1685 = vpop.f32.mrb[0].mxu0
  %v1686 = vpop.f32.mrb[0].mxu0
  %v1687 = vpop.f32.mrb[0].mxu0
  %1688 = vdwg.mxu0
  %v1689 = vmax.f32 %v1472, %v1473
  %s1690 = scalar_lea.vmem %s5, 128
  %v1691 = vld [vmem:[%s1690] sm:$0xf]
  %v1692 = vld [vmem:[%s1690 + $0x4] sm:$0xf]
  %v1693 = vld [vmem:[%s1690 + $0x8] sm:$0xf]
  %v1694 = vld [vmem:[%s1690 + $0xc] sm:$0xf]
  %v1695 = vld [vmem:[%s1690 + $0x10] sm:$0xf]
  %v1696 = vld [vmem:[%s1690 + $0x14] sm:$0xf]
  %v1697 = vld [vmem:[%s1690 + $0x18] sm:$0xf]
  %v1698 = vld [vmem:[%s1690 + $0x1c] sm:$0xf]
  %v1699 = vld [vmem:[%s1690 + $0x20] sm:$0xf]
  %v1700 = vld [vmem:[%s1690 + $0x24] sm:$0xf]
  %v1701 = vld [vmem:[%s1690 + $0x28] sm:$0xf]
  %v1702 = vld [vmem:[%s1690 + $0x2c] sm:$0xf]
  %v1703 = vld [vmem:[%s1690 + $0x30] sm:$0xf]
  %v1704 = vld [vmem:[%s1690 + $0x34] sm:$0xf]
  %v1705 = vld [vmem:[%s1690 + $0x38] sm:$0xf]
  %v1706 = vld [vmem:[%s1690 + $0x3c] sm:$0xf]
  %v1707 = vpack.c.bf16 %v1689, %v1689
  %v1724 = vunpack.c.l.b16 %v1691
  %v1725 = vunpack.c.l.b16 %v1692
  %v1726 = vunpack.c.l.b16 %v1693
  %v1727 = vunpack.c.l.b16 %v1694
  %v1728 = vunpack.c.l.b16 %v1695
  %v1729 = vunpack.c.l.b16 %v1696
  %v1730 = vunpack.c.l.b16 %v1697
  %v1731 = vunpack.c.l.b16 %v1698
  %v1732 = vunpack.c.l.b16 %v1699
  %v1733 = vunpack.c.l.b16 %v1700
  %v1734 = vunpack.c.l.b16 %v1701
  %v1735 = vunpack.c.l.b16 %v1702
  %v1736 = vunpack.c.l.b16 %v1703
  %v1737 = vunpack.c.l.b16 %v1704
  %v1738 = vunpack.c.l.b16 %v1705
  %v1739 = vunpack.c.l.b16 %v1706
  %v1740 = vpack.c.b16 %v1725, %v1724
  %v1741 = vpack.c.b16 %v1727, %v1726
  %v1742 = vpack.c.b16 %v1729, %v1728
  %v1743 = vpack.c.b16 %v1731, %v1730
  %v1744 = vpack.c.b16 %v1733, %v1732
  %v1745 = vpack.c.b16 %v1735, %v1734
  %v1746 = vpack.c.b16 %v1737, %v1736
  %v1747 = vpack.c.b16 %v1739, %v1738
  %1756 = vmatprep.subr.bf16.mxu0 0
  %1757 = vmatpush1.bf16.msra.mxu0 %v1740
  %1758 = vmatprep.subr.bf16.mxu0 0
  %1759 = vmatpush1.bf16.msra.mxu0 %v1741
  %1760 = vmatprep.subr.bf16.mxu0 0
  %1761 = vmatpush1.bf16.msra.mxu0 %v1742
  %1762 = vmatprep.subr.bf16.mxu0 0
  %1763 = vmatpush1.bf16.msra.mxu0 %v1743
  %1764 = vmatprep.subr.bf16.mxu0 0
  %1765 = vmatpush1.bf16.msra.mxu0 %v1744
  %1766 = vmatprep.subr.bf16.mxu0 0
  %1767 = vmatpush1.bf16.msra.mxu0 %v1745
  %1768 = vmatprep.subr.bf16.mxu0 0
  %1769 = vmatpush1.bf16.msra.mxu0 %v1746
  %1770 = vmatprep.subr.bf16.mxu0 0
  %1771 = vmatpush1.bf16.msra.mxu0 %v1747
  %1772 = vmatprep.subr.bf16.mxu0 0
  %1773 = vmatpush1.bf16.msra.mxu0 0
  %1774 = vmatprep.subr.bf16.mxu0 0
  %1775 = vmatpush1.bf16.msra.mxu0 0
  %1776 = vmatprep.subr.bf16.mxu0 0
  %1777 = vmatpush1.bf16.msra.mxu0 0
  %1778 = vmatprep.subr.bf16.mxu0 0
  %1779 = vmatpush1.bf16.msra.mxu0 0
  %1780 = vmatprep.subr.bf16.mxu0 0
  %1781 = vmatpush1.bf16.msra.mxu0 0
  %1782 = vmatprep.subr.bf16.mxu0 0
  %1783 = vmatpush1.bf16.msra.mxu0 0
  %1784 = vmatprep.subr.bf16.mxu0 0
  %1785 = vmatpush1.bf16.msra.mxu0 0
  %1786 = vmatprep.subr.bf16.mxu0 0
  %1787 = vmatpush1.bf16.msra.mxu0 0
  %1788 = vmatprep.mubr.bf16.mxu0 0
  %1789 = vmatmul.mubr.bf16.gmra.mrb[0].mxu0 %v1707
  %v1790 = vpop.f32.mrb[0].mxu0
  %v1791 = vadd.f32 0.0, %v1790
  %v1792 = vpop.f32.mrb[0].mxu0
  %v1793 = vpop.f32.mrb[0].mxu0
  %v1794 = vpop.f32.mrb[0].mxu0
  %1795 = vdwg.mxu0
  %v1796 = vadd.f32 %v1684, %v1791
  %v1797 = vmax.f32 %v1474, %v1475
  %s1798 = scalar_lea.vmem %s5, 192
  %v1799 = vld [vmem:[%s1798] sm:$0xf]
  %v1800 = vld [vmem:[%s1798 + $0x4] sm:$0xf]
  %v1801 = vld [vmem:[%s1798 + $0x8] sm:$0xf]
  %v1802 = vld [vmem:[%s1798 + $0xc] sm:$0xf]
  %v1803 = vld [vmem:[%s1798 + $0x10] sm:$0xf]
  %v1804 = vld [vmem:[%s1798 + $0x14] sm:$0xf]
  %v1805 = vld [vmem:[%s1798 + $0x18] sm:$0xf]
  %v1806 = vld [vmem:[%s1798 + $0x1c] sm:$0xf]
  %v1807 = vld [vmem:[%s1798 + $0x20] sm:$0xf]
  %v1808 = vld [vmem:[%s1798 + $0x24] sm:$0xf]
  %v1809 = vld [vmem:[%s1798 + $0x28] sm:$0xf]
  %v1810 = vld [vmem:[%s1798 + $0x2c] sm:$0xf]
  %v1811 = vld [vmem:[%s1798 + $0x30] sm:$0xf]
  %v1812 = vld [vmem:[%s1798 + $0x34] sm:$0xf]
  %v1813 = vld [vmem:[%s1798 + $0x38] sm:$0xf]
  %v1814 = vld [vmem:[%s1798 + $0x3c] sm:$0xf]
  %v1815 = vpack.c.bf16 %v1797, %v1797
  %v1832 = vunpack.c.l.b16 %v1799
  %v1833 = vunpack.c.l.b16 %v1800
  %v1834 = vunpack.c.l.b16 %v1801
  %v1835 = vunpack.c.l.b16 %v1802
  %v1836 = vunpack.c.l.b16 %v1803
  %v1837 = vunpack.c.l.b16 %v1804
  %v1838 = vunpack.c.l.b16 %v1805
  %v1839 = vunpack.c.l.b16 %v1806
  %v1840 = vunpack.c.l.b16 %v1807
  %v1841 = vunpack.c.l.b16 %v1808
  %v1842 = vunpack.c.l.b16 %v1809
  %v1843 = vunpack.c.l.b16 %v1810
  %v1844 = vunpack.c.l.b16 %v1811
  %v1845 = vunpack.c.l.b16 %v1812
  %v1846 = vunpack.c.l.b16 %v1813
  %v1847 = vunpack.c.l.b16 %v1814
  %v1848 = vpack.c.b16 %v1833, %v1832
  %v1849 = vpack.c.b16 %v1835, %v1834
  %v1850 = vpack.c.b16 %v1837, %v1836
  %v1851 = vpack.c.b16 %v1839, %v1838
  %v1852 = vpack.c.b16 %v1841, %v1840
  %v1853 = vpack.c.b16 %v1843, %v1842
  %v1854 = vpack.c.b16 %v1845, %v1844
  %v1855 = vpack.c.b16 %v1847, %v1846
  %1864 = vmatprep.subr.bf16.mxu0 0
  %1865 = vmatpush1.bf16.msra.mxu0 %v1848
  %1866 = vmatprep.subr.bf16.mxu0 0
  %1867 = vmatpush1.bf16.msra.mxu0 %v1849
  %1868 = vmatprep.subr.bf16.mxu0 0
  %1869 = vmatpush1.bf16.msra.mxu0 %v1850
  %1870 = vmatprep.subr.bf16.mxu0 0
  %1871 = vmatpush1.bf16.msra.mxu0 %v1851
  %1872 = vmatprep.subr.bf16.mxu0 0
  %1873 = vmatpush1.bf16.msra.mxu0 %v1852
  %1874 = vmatprep.subr.bf16.mxu0 0
  %1875 = vmatpush1.bf16.msra.mxu0 %v1853
  %1876 = vmatprep.subr.bf16.mxu0 0
  %1877 = vmatpush1.bf16.msra.mxu0 %v1854
  %1878 = vmatprep.subr.bf16.mxu0 0
  %1879 = vmatpush1.bf16.msra.mxu0 %v1855
  %1880 = vmatprep.subr.bf16.mxu0 0
  %1881 = vmatpush1.bf16.msra.mxu0 0
  %1882 = vmatprep.subr.bf16.mxu0 0
  %1883 = vmatpush1.bf16.msra.mxu0 0
  %1884 = vmatprep.subr.bf16.mxu0 0
  %1885 = vmatpush1.bf16.msra.mxu0 0
  %1886 = vmatprep.subr.bf16.mxu0 0
  %1887 = vmatpush1.bf16.msra.mxu0 0
  %1888 = vmatprep.subr.bf16.mxu0 0
  %1889 = vmatpush1.bf16.msra.mxu0 0
  %1890 = vmatprep.subr.bf16.mxu0 0
  %1891 = vmatpush1.bf16.msra.mxu0 0
  %1892 = vmatprep.subr.bf16.mxu0 0
  %1893 = vmatpush1.bf16.msra.mxu0 0
  %1894 = vmatprep.subr.bf16.mxu0 0
  %1895 = vmatpush1.bf16.msra.mxu0 0
  %1896 = vmatprep.mubr.bf16.mxu0 0
  %1897 = vmatmul.mubr.bf16.gmra.mrb[0].mxu0 %v1815
  %v1898 = vpop.f32.mrb[0].mxu0
  %v1899 = vadd.f32 0.0, %v1898
  %v1900 = vpop.f32.mrb[0].mxu0
  %v1901 = vpop.f32.mrb[0].mxu0
  %v1902 = vpop.f32.mrb[0].mxu0
  %1903 = vdwg.mxu0
  %v1904 = vadd.f32 %v1796, %v1899
  %v1905 = vld [vmem:[%s6] sm:$0x1]
  %v1907 = vlaneseq
  %v1908 = vshrl.u32 %v1907, 7
  %v1909 = vsub.s32 0, %v1908
  %v1910 = vrot.slane %v1905, %v1909
  %v1912 = vadd.f32 %v1904, %v1910
  %v1913 = vmax.f32 %v1912, 0.0
  %v1914 = vld [vmem:[%s7] sm:$0xf]
  %v1915 = vld [vmem:[%s7 + $0x4] sm:$0xf]
  %v1916 = vld [vmem:[%s7 + $0x8] sm:$0xf]
  %v1917 = vld [vmem:[%s7 + $0xc] sm:$0xf]
  %v1918 = vld [vmem:[%s7 + $0x10] sm:$0xf]
  %v1919 = vld [vmem:[%s7 + $0x14] sm:$0xf]
  %v1920 = vld [vmem:[%s7 + $0x18] sm:$0xf]
  %v1921 = vld [vmem:[%s7 + $0x1c] sm:$0xf]
  %v1922 = vld [vmem:[%s7 + $0x20] sm:$0xf]
  %v1923 = vld [vmem:[%s7 + $0x24] sm:$0xf]
  %v1924 = vld [vmem:[%s7 + $0x28] sm:$0xf]
  %v1925 = vld [vmem:[%s7 + $0x2c] sm:$0xf]
  %v1926 = vld [vmem:[%s7 + $0x30] sm:$0xf]
  %v1927 = vld [vmem:[%s7 + $0x34] sm:$0xf]
  %v1928 = vld [vmem:[%s7 + $0x38] sm:$0xf]
  %v1929 = vld [vmem:[%s7 + $0x3c] sm:$0xf]
  %v1930 = vpack.c.bf16 %v1913, %v1913
  %v1931 = vld [vmem:[%s8] sm:$0x1]
  %v1933 = vlaneseq
  %v1934 = vshrl.u32 %v1933, 7
  %v1935 = vsub.s32 0, %v1934
  %v1936 = vrot.slane %v1931, %v1935
  %v1954 = vunpack.c.l.b16 %v1914
  %v1955 = vunpack.c.l.b16 %v1915
  %v1956 = vunpack.c.l.b16 %v1916
  %v1957 = vunpack.c.l.b16 %v1917
  %v1958 = vunpack.c.l.b16 %v1918
  %v1959 = vunpack.c.l.b16 %v1919
  %v1960 = vunpack.c.l.b16 %v1920
  %v1961 = vunpack.c.l.b16 %v1921
  %v1962 = vunpack.c.l.b16 %v1922
  %v1963 = vunpack.c.l.b16 %v1923
  %v1964 = vunpack.c.l.b16 %v1924
  %v1965 = vunpack.c.l.b16 %v1925
  %v1966 = vunpack.c.l.b16 %v1926
  %v1967 = vunpack.c.l.b16 %v1927
  %v1968 = vunpack.c.l.b16 %v1928
  %v1969 = vunpack.c.l.b16 %v1929
  %v1970 = vpack.c.b16 %v1955, %v1954
  %v1971 = vpack.c.b16 %v1957, %v1956
  %v1972 = vpack.c.b16 %v1959, %v1958
  %v1973 = vpack.c.b16 %v1961, %v1960
  %v1974 = vpack.c.b16 %v1963, %v1962
  %v1975 = vpack.c.b16 %v1965, %v1964
  %v1976 = vpack.c.b16 %v1967, %v1966
  %v1977 = vpack.c.b16 %v1969, %v1968
  %1986 = vmatprep.subr.bf16.mxu0 0
  %1987 = vmatpush1.bf16.msra.mxu0 %v1970
  %1988 = vmatprep.subr.bf16.mxu0 0
  %1989 = vmatpush1.bf16.msra.mxu0 %v1971
  %1990 = vmatprep.subr.bf16.mxu0 0
  %1991 = vmatpush1.bf16.msra.mxu0 %v1972
  %1992 = vmatprep.subr.bf16.mxu0 0
  %1993 = vmatpush1.bf16.msra.mxu0 %v1973
  %1994 = vmatprep.subr.bf16.mxu0 0
  %1995 = vmatpush1.bf16.msra.mxu0 %v1974
  %1996 = vmatprep.subr.bf16.mxu0 0
  %1997 = vmatpush1.bf16.msra.mxu0 %v1975
  %1998 = vmatprep.subr.bf16.mxu0 0
  %1999 = vmatpush1.bf16.msra.mxu0 %v1976
  %2000 = vmatprep.subr.bf16.mxu0 0
  %2001 = vmatpush1.bf16.msra.mxu0 %v1977
  %2002 = vmatprep.subr.bf16.mxu0 0
  %2003 = vmatpush1.bf16.msra.mxu0 0
  %2004 = vmatprep.subr.bf16.mxu0 0
  %2005 = vmatpush1.bf16.msra.mxu0 0
  %2006 = vmatprep.subr.bf16.mxu0 0
  %2007 = vmatpush1.bf16.msra.mxu0 0
  %2008 = vmatprep.subr.bf16.mxu0 0
  %2009 = vmatpush1.bf16.msra.mxu0 0
  %2010 = vmatprep.subr.bf16.mxu0 0
  %2011 = vmatpush1.bf16.msra.mxu0 0
  %2012 = vmatprep.subr.bf16.mxu0 0
  %2013 = vmatpush1.bf16.msra.mxu0 0
  %2014 = vmatprep.subr.bf16.mxu0 0
  %2015 = vmatpush1.bf16.msra.mxu0 0
  %2016 = vmatprep.subr.bf16.mxu0 0
  %2017 = vmatpush1.bf16.msra.mxu0 0
  %2018 = vmatprep.mubr.bf16.mxu0 0
  %2019 = vmatmul.mubr.bf16.gmra.mrb[0].mxu0 %v1930
  %v2020 = vpop.f32.mrb[0].mxu0
  %v2021 = vadd.f32 %v1936, %v2020
  %v2022 = vpop.f32.mrb[0].mxu0
  %v2023 = vpop.f32.mrb[0].mxu0
  %v2024 = vpop.f32.mrb[0].mxu0
  %2025 = vdwg.mxu0
  %2026 = vst [vmem:[%s9] sm:$0xff] %v2021
  %2027 = vst [vmem:[%s10] sm:$0xff] %v1913
  // Predicated region
  $region38: #{mnist_net_forward.1} parent=0 // pred_check
    _
  $region39: #{mnist_net_forward.1} parent=0 // pred_check_branch
    %2029 = sbr.rel (0) target = $region41
  $region40: #{mnist_net_forward.1} parent=0 // pred_region
    _
  $region41: #{mnist_net_forward.1} parent=0 // pred_fallthru
    _
  // Predicated region
  $region42: #{mnist_net_forward.1} parent=0 // pred_check
    _
  $region43: #{mnist_net_forward.1} parent=0 // pred_check_branch
    %2031 = sbr.rel (0) target = $region45
  $region44: #{mnist_net_forward.1} parent=0 // pred_region
    _
  $region45: #{mnist_net_forward.1} parent=0 // pred_fallthru
    _
  // Predicated region
  $region46: #{mnist_net_forward.1} parent=0 // pred_check
    _
  $region47: #{mnist_net_forward.1} parent=0 // pred_check_branch
    %2033 = sbr.rel (0) target = $region49
  $region48: #{mnist_net_forward.1} parent=0 // pred_region
    _
  $region49: #{mnist_net_forward.1} parent=0 // pred_fallthru
    _
  // Predicated region
  $region50: #{mnist_net_forward.1} parent=0 // pred_check
    _
  $region51: #{mnist_net_forward.1} parent=0 // pred_check_branch
    %2035 = sbr.rel (0) target = $region53
  $region52: #{mnist_net_forward.1} parent=0 // pred_region
    _
  $region53: #{mnist_net_forward.1} parent=0 // pred_fallthru
    _

</llo_original>
